<compile_context>
chip_gen: v5e
topology: v5e:2x2
jax: 0.10.0
libtpu: 0.0.40
codegen_flags: <defaults>
</compile_context>

<pallas_src>
import functools

import jax
import jax.numpy as jnp
from jax.experimental import pallas as pl
from jax.experimental.pallas import tpu as pltpu


def _round_up(x, m):
    return ((x + m - 1) // m) * m


def _cdiv(a, b):
    return -(-a // b)


def _default_vmem_limit():
    """Budget scoped VMEM to ~3/4 of physical (64 MiB on v7x, 128 MiB v5e/v6e)."""
    try:
        cap = pltpu.get_tpu_info().vmem_capacity_bytes
        return int(min(96 * 1024 * 1024, (cap * 3) // 4))
    except Exception:
        return None


def _pick_row_tile(ho, wo):
    """Row tile t targeting M = t*Wo ~ 1024, balanced so Hpad - Ho < t."""
    t = max(1, min(32, 1024 // max(1, wo)))
    t = min(t, ho)
    n_tiles = _cdiv(ho, t)
    t = _cdiv(ho, n_tiles)
    return t, n_tiles * t  # (t, Hpad)


def _downsample_kernel(xa_ref, xb_ref, w00_ref, w10_ref, w2_ref, b_ref,
                       o_ref, acc_ref, *, t, wo, wsp, cin):
    # xa_ref : (1, t*wsp, 4*cin)  s2d rows [t*i, t*i + t), W flattened into M
    # xb_ref : (1, wsp,   4*cin)  s2d row  t*(i+1)   (halo for the last row)
    # w00_ref: (4*cin, cot)  taps (0,0),(0,1),(1,0),(1,1)
    # w10_ref: (2*cin, cot)  taps (2,0),(2,1)
    # w2_ref : (3, cin, cot) taps (0,2),(1,2),(2,2)
    # b_ref  : (1, cot) fp32 bias ; o_ref: (1, t, wo, cot)
    # acc_ref: (t*wsp, cot) fp32 VMEM scratch
    m_full = t * wsp
    c = cin

    # (dr=0, dw=0): four taps in one deep K = 4*Cin matmul over the whole tile.
    acc_ref[...] = jnp.dot(xa_ref[0], w00_ref[...],
                           preferred_element_type=jnp.float32)

    # (dr=0, dw=1): taps (0,2) and (1,2) -> same slab shifted by one s2d column
    # (flat row + 1); only the needed Cin lane groups are read (no zero-pad K).
    a01a = xa_ref[0, pl.ds(1, m_full - 1), pl.ds(0, c)]
    acc_ref[pl.ds(0, m_full - 1), :] += jnp.dot(
        a01a, w2_ref[0], preferred_element_type=jnp.float32)
    a01b = xa_ref[0, pl.ds(1, m_full - 1), pl.ds(2 * c, c)]
    acc_ref[pl.ds(0, m_full - 1), :] += jnp.dot(
        a01b, w2_ref[1], preferred_element_type=jnp.float32)

    # (dr=1): taps (2,0),(2,1),(2,2).  For output rows 0..t-2 the data is the
    # same block shifted by one s2d row (offset wsp, sublane-aligned) ...
    if t > 1:
        mm = (t - 1) * wsp
        a10 = xa_ref[0, pl.ds(wsp, mm), pl.ds(0, 2 * c)]
        acc_ref[pl.ds(0, mm), :] += jnp.dot(
            a10, w10_ref[...], preferred_element_type=jnp.float32)
        a11 = xa_ref[0, pl.ds(wsp + 1, mm - 1), pl.ds(0, c)]
        acc_ref[pl.ds(0, mm - 1), :] += jnp.dot(
            a11, w2_ref[2], preferred_element_type=jnp.float32)

    # ... and for the last output row it comes from the 1-row halo block.
    base = (t - 1) * wsp
    a10h = xb_ref[0, pl.ds(0, wsp), pl.ds(0, 2 * c)]
    acc_ref[pl.ds(base, wsp), :] += jnp.dot(
        a10h, w10_ref[...], preferred_element_type=jnp.float32)
    a11h = xb_ref[0, pl.ds(1, wsp - 1), pl.ds(0, c)]
    acc_ref[pl.ds(base, wsp - 1), :] += jnp.dot(
        a11h, w2_ref[2], preferred_element_type=jnp.float32)

    # Bias (one hoisted broadcast), cast, dense stores; drop the pad columns.
    bias_v = jnp.broadcast_to(b_ref[...], (wo, b_ref.shape[1]))
    for r in range(t):
        o_ref[0, r] = (acc_ref[pl.ds(r * wsp, wo), :] + bias_v).astype(o_ref.dtype)


def downsample2d_forward(x_nhwc, weight_oihw, bias, padding=1):
    """Pallas implementation of Downsample2D.forward.

    x_nhwc:      (N, H, W, Cin)
    weight_oihw: (Cout, Cin, 3, 3)   (PyTorch nn.Conv2d layout)
    bias:        (Cout,)
    """
    N, H, W, Cin = x_nhwc.shape
    Cout = weight_oihw.shape[0]
    out_dtype = x_nhwc.dtype
    cdt = jnp.bfloat16  # MXU operand dtype; accumulation stays fp32.

    # ---- module padding semantics ----
    if padding == 0:
        # F.pad on NHWC: +1 row at the bottom, +1 col on the right, conv pad 0.
        pad_t = pad_l = 0
        pad_b = pad_r = 1
    else:
        pad_t = pad_b = pad_l = pad_r = int(padding)

    Hp = H + pad_t + pad_b
    Wp = W + pad_l + pad_r
    Ho = (Hp - 3) // 2 + 1
    Wo = (Wp - 3) // 2 + 1

    t, Hpad = _pick_row_tile(Ho, Wo)
    n_row_tiles = Hpad // t

    # Space-to-depth geometry: s2d pixel (R, W2) = x_pad[2R:2R+2, 2W2:2W2+2].
    Wsp = _round_up(Wo + 1, 8)          # s2d cols per row (incl. halo col, 8-aligned)
    rows_alloc = 2 * (Hpad + 1)
    cols_alloc = 2 * Wsp
    C4 = 4 * Cin
    Mt = t * Wsp                         # flattened M rows per tile (incl. pad cols)

    Coutp = _round_up(Cout, 128)         # lane-dense output stores
    cot = 256 if (Coutp % 256 == 0) else 128
    n_cout_tiles = Coutp // cot

    # ---- input: pad + space-to-depth (one XLA prep pass) ----
    # TODO(synk): fold pad + space-to-depth into the kernel (manual DMA of
    # interior rows + VMEM halo zeroing) to remove this extra HBM round trip.
    x_pad = jnp.pad(
        x_nhwc.astype(cdt),
        ((0, 0),
         (pad_t, rows_alloc - pad_t - H),
         (pad_l, cols_alloc - pad_l - W),
         (0, 0)),
    )
    x_s2d = (
        x_pad.reshape(N, Hpad + 1, 2, Wsp, 2, Cin)
        .transpose(0, 1, 3, 2, 4, 5)            # (N, R, W2, ph, pw, c)
        .reshape(N, (Hpad + 1) * Wsp, C4)
    )

    # ---- weights: grouped by (dr, dw) of the s2d decomposition, no zero-K ----
    w_hwio = jnp.transpose(weight_oihw, (2, 3, 1, 0)).astype(cdt)   # (3,3,Cin,Cout)
    if Coutp != Cout:
        w_hwio = jnp.pad(w_hwio, ((0, 0), (0, 0), (0, 0), (0, Coutp - Cout)))
    w00 = jnp.concatenate(
        [w_hwio[0, 0], w_hwio[0, 1], w_hwio[1, 0], w_hwio[1, 1]], axis=0)  # (4Cin, Coutp)
    w10 = jnp.concatenate([w_hwio[2, 0], w_hwio[2, 1]], axis=0)            # (2Cin, Coutp)
    w2 = jnp.stack([w_hwio[0, 2], w_hwio[1, 2], w_hwio[2, 2]], axis=0)     # (3, Cin, Coutp)
    b_2d = jnp.pad(bias, (0, Coutp - Cout)).reshape(1, Coutp).astype(jnp.float32)

    grid = (N, n_row_tiles, n_cout_tiles)
    kernel = functools.partial(_downsample_kernel, t=t, wo=Wo, wsp=Wsp, cin=Cin)

    flops = 2 * N * Ho * Wo * 9 * Cin * Cout
    bytes_accessed = (
        x_s2d.size * 2 + (w00.size + w10.size + w2.size) * 2 + b_2d.size * 4
        + N * Ho * Wo * Cout * jnp.dtype(out_dtype).itemsize)

    out = pl.pallas_call(
        kernel,
        out_shape=jax.ShapeDtypeStruct((N, Hpad, Wo, Coutp), out_dtype),
        grid_spec=pltpu.PrefetchScalarGridSpec(
            num_scalar_prefetch=0,
            grid=grid,
            in_specs=[
                pl.BlockSpec((1, Mt, C4), lambda n, i, co: (n, i, 0)),
                pl.BlockSpec((1, Wsp, C4), lambda n, i, co: (n, (i + 1) * t, 0)),
                pl.BlockSpec((4 * Cin, cot), lambda n, i, co: (0, co)),
                pl.BlockSpec((2 * Cin, cot), lambda n, i, co: (0, co)),
                pl.BlockSpec((3, Cin, cot), lambda n, i, co: (0, 0, co)),
                pl.BlockSpec((1, cot), lambda n, i, co: (0, co)),
            ],
            out_specs=pl.BlockSpec((1, t, Wo, cot), lambda n, i, co: (n, i, 0, co)),
            scratch_shapes=[pltpu.VMEM((Mt, cot), jnp.float32)],
        ),
        compiler_params=pltpu.CompilerParams(
            dimension_semantics=("parallel", "parallel", "parallel"),
            vmem_limit_bytes=_default_vmem_limit(),
        ),
        cost_estimate=pl.CostEstimate(
            flops=flops, transcendentals=0, bytes_accessed=int(bytes_accessed)),
    )(x_s2d, x_s2d, w00, w10, w2, b_2d)

    if Hpad != Ho or Coutp != Cout:
        out = out[:, :Ho, :, :Cout]
    return out


def _reference(x_nhwc, weight_oihw, bias, padding=1):
    """Pure-JAX fp32 reference (mirrors the module's F.conv2d semantics)."""
    if padding == 0:
        x_nhwc = jnp.pad(x_nhwc, ((0, 0), (0, 1), (0, 1), (0, 0)))
        conv_pad = 0
    else:
        conv_pad = padding
    w_hwio = jnp.transpose(weight_oihw, (2, 3, 1, 0))
    out = jax.lax.conv_general_dilated(
        x_nhwc, w_hwio,
        window_strides=(2, 2),
        padding=[(conv_pad, conv_pad), (conv_pad, conv_pad)],
        dimension_numbers=("NHWC", "HWIO", "NHWC"),
    )
    return out + bias


if __name__ == "__main__":
    key = jax.random.PRNGKey(0)
    k_x, k_w, k_b, k_x2, k_w2, k_b2 = jax.random.split(key, 6)

    ok = True

    # Config 1: module defaults (out_channels == channels), both padding modes.
    N, H, W, Cin = 2, 16, 16, 4
    Cout = 4
    x = jax.random.normal(k_x, (N, H, W, Cin), dtype=jnp.float32)
    weight = jax.random.normal(k_w, (Cout, Cin, 3, 3), dtype=jnp.float32) * 0.1
    bias = jax.random.normal(k_b, (Cout,), dtype=jnp.float32) * 0.1
    for padding in (1, 0):
        out = jax.block_until_ready(
            downsample2d_forward(x, weight, bias, padding=padding))
        ref = jax.block_until_ready(
            _reference(x, weight, bias, padding=padding))
        # bf16 MXU operands with fp32 accumulation -> few e-3 abs error expected.
        if out.shape != ref.shape or not jnp.allclose(out, ref, atol=2e-2, rtol=2e-2):
            ok = False

    # Config 2: Cout != Cin, non-square spatial size.
    N2, H2, W2d, Cin2, Cout2 = 1, 12, 20, 8, 16
    x2 = jax.random.normal(k_x2, (N2, H2, W2d, Cin2), dtype=jnp.float32)
    weight2 = jax.random.normal(k_w2, (Cout2, Cin2, 3, 3), dtype=jnp.float32) * 0.1
    bias2 = jax.random.normal(k_b2, (Cout2,), dtype=jnp.float32) * 0.1
    out2 = jax.block_until_ready(
        downsample2d_forward(x2, weight2, bias2, padding=1))
    ref2 = jax.block_until_ready(
        _reference(x2, weight2, bias2, padding=1))
    if out2.shape != ref2.shape or not jnp.allclose(out2, ref2, atol=2e-2, rtol=2e-2):
        ok = False

    if ok:
        print("KERNEL_OK")
</pallas_src>

<mosaic_0001>
module attributes {stable_mosaic.version = 11 : i64} {
  func.func @_downsample_kernel(%arg0: i32, %arg1: i32, %arg2: i32, %arg3: memref<1x128x16xbf16, #tpu.memory_space<vmem>>, %arg4: memref<1x16x16xbf16, #tpu.memory_space<vmem>>, %arg5: memref<16x128xbf16, #tpu.memory_space<vmem>>, %arg6: memref<8x128xbf16, #tpu.memory_space<vmem>>, %arg7: memref<3x4x128xbf16, #tpu.memory_space<vmem>>, %arg8: memref<1x128xf32, #tpu.memory_space<vmem>>, %arg9: memref<1x8x8x128xf32, #tpu.memory_space<vmem>>, %arg10: memref<128x128xf32, #tpu.memory_space<vmem>>) attributes {dimension_semantics = [#tpu.dimension_semantics<parallel>, #tpu.dimension_semantics<parallel>, #tpu.dimension_semantics<parallel>], iteration_bounds = array<i64: 2, 1, 1>, scalar_prefetch = 0 : i64, scratch_operands = 1 : i64, tpu.core_type = #tpu.core_type<tc>, window_params = [{transform_indices = @transform_0, window_bounds = array<i64: 1, 128, 16>}, {transform_indices = @transform_1, window_bounds = array<i64: 1, 16, 16>}, {transform_indices = @transform_2, window_bounds = array<i64: 16, 128>}, {transform_indices = @transform_3, window_bounds = array<i64: 8, 128>}, {transform_indices = @transform_4, window_bounds = array<i64: 3, 4, 128>}, {transform_indices = @transform_5, window_bounds = array<i64: 1, 128>}, {transform_indices = @transform_6, window_bounds = array<i64: 1, 8, 8, 128>}]} {
    %c0 = arith.constant 0 : index
    %c0_0 = arith.constant 0 : index
    %c0_1 = arith.constant 0 : index
    %0 = vector.load %arg3[%c0, %c0_0, %c0_1] : memref<1x128x16xbf16, #tpu.memory_space<vmem>>, vector<1x128x16xbf16>
    %1 = vector.shape_cast %0 : vector<1x128x16xbf16> to vector<128x16xbf16>
    %c0_2 = arith.constant 0 : index
    %c0_3 = arith.constant 0 : index
    %2 = vector.load %arg5[%c0_2, %c0_3] : memref<16x128xbf16, #tpu.memory_space<vmem>>, vector<16x128xbf16>
    %cst = arith.constant dense<0.000000e+00> : vector<128x128xf32>
    %3 = tpu.matmul %1, %2, %cst {dimension_numbers = #tpu.dot_dimension_numbers<[1], [0], [0], [1], [0, 0, 1, 1], [], []>} : vector<128x16xbf16>, vector<16x128xbf16>, vector<128x128xf32> -> vector<128x128xf32>
    %c0_4 = arith.constant 0 : index
    %c0_5 = arith.constant 0 : index
    %4 = vector.load %arg10[%c0_4, %c0_5] : memref<128x128xf32, #tpu.memory_space<vmem>>, vector<128x128xf32>
    tpu.vector_store %arg10[%c0_4, %c0_5], %3 {strides = array<i32>} : memref<128x128xf32, #tpu.memory_space<vmem>>, vector<128x128xf32>,
    %c0_6 = arith.constant 0 : index
    %c1 = arith.constant 1 : index
    %c0_7 = arith.constant 0 : index
    %5 = vector.load %arg3[%c0_6, %c1, %c0_7] : memref<1x128x16xbf16, #tpu.memory_space<vmem>>, vector<1x127x4xbf16>
    %6 = vector.shape_cast %5 : vector<1x127x4xbf16> to vector<127x4xbf16>
    %c0_8 = arith.constant 0 : index
    %c0_9 = arith.constant 0 : index
    %7 = vector.load %arg10[%c0_8, %c0_9] : memref<128x128xf32, #tpu.memory_space<vmem>>, vector<127x128xf32>
    %c0_10 = arith.constant 0 : index
    %c0_11 = arith.constant 0 : index
    %c0_12 = arith.constant 0 : index
    %8 = vector.load %arg7[%c0_10, %c0_11, %c0_12] : memref<3x4x128xbf16, #tpu.memory_space<vmem>>, vector<1x4x128xbf16>
    %9 = vector.shape_cast %8 : vector<1x4x128xbf16> to vector<4x128xbf16>
    %cst_13 = arith.constant dense<0.000000e+00> : vector<127x128xf32>
    %10 = tpu.matmul %6, %9, %cst_13 {dimension_numbers = #tpu.dot_dimension_numbers<[1], [0], [0], [1], [0, 0, 1, 1], [], []>} : vector<127x4xbf16>, vector<4x128xbf16>, vector<127x128xf32> -> vector<127x128xf32>
    %11 = arith.addf %7, %10 : vector<127x128xf32>
    %c0_14 = arith.constant 0 : index
    %c0_15 = arith.constant 0 : index
    %12 = vector.load %arg10[%c0_14, %c0_15] : memref<128x128xf32, #tpu.memory_space<vmem>>, vector<127x128xf32>
    tpu.vector_store %arg10[%c0_14, %c0_15], %11 {strides = array<i32>} : memref<128x128xf32, #tpu.memory_space<vmem>>, vector<127x128xf32>,
    %c0_16 = arith.constant 0 : index
    %c1_17 = arith.constant 1 : index
    %c8 = arith.constant 8 : index
    %13 = vector.load %arg3[%c0_16, %c1_17, %c8] : memref<1x128x16xbf16, #tpu.memory_space<vmem>>, vector<1x127x4xbf16>
    %14 = vector.shape_cast %13 : vector<1x127x4xbf16> to vector<127x4xbf16>
    %c0_18 = arith.constant 0 : index
    %c0_19 = arith.constant 0 : index
    %15 = vector.load %arg10[%c0_18, %c0_19] : memref<128x128xf32, #tpu.memory_space<vmem>>, vector<127x128xf32>
    %c1_20 = arith.constant 1 : index
    %c0_21 = arith.constant 0 : index
    %c0_22 = arith.constant 0 : index
    %16 = vector.load %arg7[%c1_20, %c0_21, %c0_22] : memref<3x4x128xbf16, #tpu.memory_space<vmem>>, vector<1x4x128xbf16>
    %17 = vector.shape_cast %16 : vector<1x4x128xbf16> to vector<4x128xbf16>
    %cst_23 = arith.constant dense<0.000000e+00> : vector<127x128xf32>
    %18 = tpu.matmul %14, %17, %cst_23 {dimension_numbers = #tpu.dot_dimension_numbers<[1], [0], [0], [1], [0, 0, 1, 1], [], []>} : vector<127x4xbf16>, vector<4x128xbf16>, vector<127x128xf32> -> vector<127x128xf32>
    %19 = arith.addf %15, %18 : vector<127x128xf32>
    %c0_24 = arith.constant 0 : index
    %c0_25 = arith.constant 0 : index
    %20 = vector.load %arg10[%c0_24, %c0_25] : memref<128x128xf32, #tpu.memory_space<vmem>>, vector<127x128xf32>
    tpu.vector_store %arg10[%c0_24, %c0_25], %19 {strides = array<i32>} : memref<128x128xf32, #tpu.memory_space<vmem>>, vector<127x128xf32>,
    %c0_26 = arith.constant 0 : index
    %c16 = arith.constant 16 : index
    %c0_27 = arith.constant 0 : index
    %21 = vector.load %arg3[%c0_26, %c16, %c0_27] : memref<1x128x16xbf16, #tpu.memory_space<vmem>>, vector<1x112x8xbf16>
    %22 = vector.shape_cast %21 : vector<1x112x8xbf16> to vector<112x8xbf16>
    %c0_28 = arith.constant 0 : index
    %c0_29 = arith.constant 0 : index
    %23 = vector.load %arg10[%c0_28, %c0_29] : memref<128x128xf32, #tpu.memory_space<vmem>>, vector<112x128xf32>
    %c0_30 = arith.constant 0 : index
    %c0_31 = arith.constant 0 : index
    %24 = vector.load %arg6[%c0_30, %c0_31] : memref<8x128xbf16, #tpu.memory_space<vmem>>, vector<8x128xbf16>
    %cst_32 = arith.constant dense<0.000000e+00> : vector<112x128xf32>
    %25 = tpu.matmul %22, %24, %cst_32 {dimension_numbers = #tpu.dot_dimension_numbers<[1], [0], [0], [1], [0, 0, 1, 1], [], []>} : vector<112x8xbf16>, vector<8x128xbf16>, vector<112x128xf32> -> vector<112x128xf32>
    %26 = arith.addf %23, %25 : vector<112x128xf32>
    %c0_33 = arith.constant 0 : index
    %c0_34 = arith.constant 0 : index
    %27 = vector.load %arg10[%c0_33, %c0_34] : memref<128x128xf32, #tpu.memory_space<vmem>>, vector<112x128xf32>
    tpu.vector_store %arg10[%c0_33, %c0_34], %26 {strides = array<i32>} : memref<128x128xf32, #tpu.memory_space<vmem>>, vector<112x128xf32>,
    %c0_35 = arith.constant 0 : index
    %c17 = arith.constant 17 : index
    %c0_36 = arith.constant 0 : index
    %28 = vector.load %arg3[%c0_35, %c17, %c0_36] : memref<1x128x16xbf16, #tpu.memory_space<vmem>>, vector<1x111x4xbf16>
    %29 = vector.shape_cast %28 : vector<1x111x4xbf16> to vector<111x4xbf16>
    %c0_37 = arith.constant 0 : index
    %c0_38 = arith.constant 0 : index
    %30 = vector.load %arg10[%c0_37, %c0_38] : memref<128x128xf32, #tpu.memory_space<vmem>>, vector<111x128xf32>
    %c2 = arith.constant 2 : index
    %c0_39 = arith.constant 0 : index
    %c0_40 = arith.constant 0 : index
    %31 = vector.load %arg7[%c2, %c0_39, %c0_40] : memref<3x4x128xbf16, #tpu.memory_space<vmem>>, vector<1x4x128xbf16>
    %32 = vector.shape_cast %31 : vector<1x4x128xbf16> to vector<4x128xbf16>
    %cst_41 = arith.constant dense<0.000000e+00> : vector<111x128xf32>
    %33 = tpu.matmul %29, %32, %cst_41 {dimension_numbers = #tpu.dot_dimension_numbers<[1], [0], [0], [1], [0, 0, 1, 1], [], []>} : vector<111x4xbf16>, vector<4x128xbf16>, vector<111x128xf32> -> vector<111x128xf32>
    %34 = arith.addf %30, %33 : vector<111x128xf32>
    %c0_42 = arith.constant 0 : index
    %c0_43 = arith.constant 0 : index
    %35 = vector.load %arg10[%c0_42, %c0_43] : memref<128x128xf32, #tpu.memory_space<vmem>>, vector<111x128xf32>
    tpu.vector_store %arg10[%c0_42, %c0_43], %34 {strides = array<i32>} : memref<128x128xf32, #tpu.memory_space<vmem>>, vector<111x128xf32>,
    %c0_44 = arith.constant 0 : index
    %c0_45 = arith.constant 0 : index
    %c0_46 = arith.constant 0 : index
    %36 = vector.load %arg4[%c0_44, %c0_45, %c0_46] : memref<1x16x16xbf16, #tpu.memory_space<vmem>>, vector<1x16x8xbf16>
    %37 = vector.shape_cast %36 : vector<1x16x8xbf16> to vector<16x8xbf16>
    %c112 = arith.constant 112 : index
    %c0_47 = arith.constant 0 : index
    %38 = vector.load %arg10[%c112, %c0_47] : memref<128x128xf32, #tpu.memory_space<vmem>>, vector<16x128xf32>
    %c0_48 = arith.constant 0 : index
    %c0_49 = arith.constant 0 : index
    %39 = vector.load %arg6[%c0_48, %c0_49] : memref<8x128xbf16, #tpu.memory_space<vmem>>, vector<8x128xbf16>
    %cst_50 = arith.constant dense<0.000000e+00> : vector<16x128xf32>
    %40 = tpu.matmul %37, %39, %cst_50 {dimension_numbers = #tpu.dot_dimension_numbers<[1], [0], [0], [1], [0, 0, 1, 1], [], []>} : vector<16x8xbf16>, vector<8x128xbf16>, vector<16x128xf32> -> vector<16x128xf32>
    %41 = arith.addf %38, %40 : vector<16x128xf32>
    %c112_51 = arith.constant 112 : index
    %c0_52 = arith.constant 0 : index
    %42 = vector.load %arg10[%c112_51, %c0_52] : memref<128x128xf32, #tpu.memory_space<vmem>>, vector<16x128xf32>
    tpu.vector_store %arg10[%c112_51, %c0_52], %41 {strides = array<i32>} : memref<128x128xf32, #tpu.memory_space<vmem>>, vector<16x128xf32>,
    %c0_53 = arith.constant 0 : index
    %c1_54 = arith.constant 1 : index
    %c0_55 = arith.constant 0 : index
    %43 = vector.load %arg4[%c0_53, %c1_54, %c0_55] : memref<1x16x16xbf16, #tpu.memory_space<vmem>>, vector<1x15x4xbf16>
    %44 = vector.shape_cast %43 : vector<1x15x4xbf16> to vector<15x4xbf16>
    %c112_56 = arith.constant 112 : index
    %c0_57 = arith.constant 0 : index
    %45 = vector.load %arg10[%c112_56, %c0_57] : memref<128x128xf32, #tpu.memory_space<vmem>>, vector<15x128xf32>
    %c2_58 = arith.constant 2 : index
    %c0_59 = arith.constant 0 : index
    %c0_60 = arith.constant 0 : index
    %46 = vector.load %arg7[%c2_58, %c0_59, %c0_60] : memref<3x4x128xbf16, #tpu.memory_space<vmem>>, vector<1x4x128xbf16>
    %47 = vector.shape_cast %46 : vector<1x4x128xbf16> to vector<4x128xbf16>
    %cst_61 = arith.constant dense<0.000000e+00> : vector<15x128xf32>
    %48 = tpu.matmul %44, %47, %cst_61 {dimension_numbers = #tpu.dot_dimension_numbers<[1], [0], [0], [1], [0, 0, 1, 1], [], []>} : vector<15x4xbf16>, vector<4x128xbf16>, vector<15x128xf32> -> vector<15x128xf32>
    %49 = arith.addf %45, %48 : vector<15x128xf32>
    %c112_62 = arith.constant 112 : index
    %c0_63 = arith.constant 0 : index
    %50 = vector.load %arg10[%c112_62, %c0_63] : memref<128x128xf32, #tpu.memory_space<vmem>>, vector<15x128xf32>
    tpu.vector_store %arg10[%c112_62, %c0_63], %49 {strides = array<i32>} : memref<128x128xf32, #tpu.memory_space<vmem>>, vector<15x128xf32>,
    %c0_64 = arith.constant 0 : index
    %c0_65 = arith.constant 0 : index
    %51 = vector.load %arg8[%c0_64, %c0_65] : memref<1x128xf32, #tpu.memory_space<vmem>>, vector<1x128xf32>
    %52 = vector.shape_cast %51 : vector<1x128xf32> to vector<1x128xf32>
    %53 = vector.broadcast %52 : vector<1x128xf32> to vector<8x128xf32>
    %c0_66 = arith.constant 0 : index
    %c0_67 = arith.constant 0 : index
    %54 = vector.load %arg10[%c0_66, %c0_67] : memref<128x128xf32, #tpu.memory_space<vmem>>, vector<8x128xf32>
    %55 = arith.addf %54, %53 : vector<8x128xf32>
    %c0_68 = arith.constant 0 : index
    %c0_69 = arith.constant 0 : index
    %c0_70 = arith.constant 0 : index
    %c0_71 = arith.constant 0 : index
    %56 = vector.load %arg9[%c0_68, %c0_69, %c0_70, %c0_71] : memref<1x8x8x128xf32, #tpu.memory_space<vmem>>, vector<1x1x8x128xf32>
    %57 = vector.shape_cast %56 : vector<1x1x8x128xf32> to vector<8x128xf32>
    %58 = vector.shape_cast %55 : vector<8x128xf32> to vector<1x1x8x128xf32>
    tpu.vector_store %arg9[%c0_68, %c0_69, %c0_70, %c0_71], %58 {strides = array<i32>} : memref<1x8x8x128xf32, #tpu.memory_space<vmem>>, vector<1x1x8x128xf32>,
    %c16_72 = arith.constant 16 : index
    %c0_73 = arith.constant 0 : index
    %59 = vector.load %arg10[%c16_72, %c0_73] : memref<128x128xf32, #tpu.memory_space<vmem>>, vector<8x128xf32>
    %60 = arith.addf %59, %53 : vector<8x128xf32>
    %c0_74 = arith.constant 0 : index
    %c1_75 = arith.constant 1 : index
    %c0_76 = arith.constant 0 : index
    %c0_77 = arith.constant 0 : index
    %61 = vector.load %arg9[%c0_74, %c1_75, %c0_76, %c0_77] : memref<1x8x8x128xf32, #tpu.memory_space<vmem>>, vector<1x1x8x128xf32>
    %62 = vector.shape_cast %61 : vector<1x1x8x128xf32> to vector<8x128xf32>
    %63 = vector.shape_cast %60 : vector<8x128xf32> to vector<1x1x8x128xf32>
    tpu.vector_store %arg9[%c0_74, %c1_75, %c0_76, %c0_77], %63 {strides = array<i32>} : memref<1x8x8x128xf32, #tpu.memory_space<vmem>>, vector<1x1x8x128xf32>,
    %c32 = arith.constant 32 : index
    %c0_78 = arith.constant 0 : index
    %64 = vector.load %arg10[%c32, %c0_78] : memref<128x128xf32, #tpu.memory_space<vmem>>, vector<8x128xf32>
    %65 = arith.addf %64, %53 : vector<8x128xf32>
    %c0_79 = arith.constant 0 : index
    %c2_80 = arith.constant 2 : index
    %c0_81 = arith.constant 0 : index
    %c0_82 = arith.constant 0 : index
    %66 = vector.load %arg9[%c0_79, %c2_80, %c0_81, %c0_82] : memref<1x8x8x128xf32, #tpu.memory_space<vmem>>, vector<1x1x8x128xf32>
    %67 = vector.shape_cast %66 : vector<1x1x8x128xf32> to vector<8x128xf32>
    %68 = vector.shape_cast %65 : vector<8x128xf32> to vector<1x1x8x128xf32>
    tpu.vector_store %arg9[%c0_79, %c2_80, %c0_81, %c0_82], %68 {strides = array<i32>} : memref<1x8x8x128xf32, #tpu.memory_space<vmem>>, vector<1x1x8x128xf32>,
    %c48 = arith.constant 48 : index
    %c0_83 = arith.constant 0 : index
    %69 = vector.load %arg10[%c48, %c0_83] : memref<128x128xf32, #tpu.memory_space<vmem>>, vector<8x128xf32>
    %70 = arith.addf %69, %53 : vector<8x128xf32>
    %c0_84 = arith.constant 0 : index
    %c3 = arith.constant 3 : index
    %c0_85 = arith.constant 0 : index
    %c0_86 = arith.constant 0 : index
    %71 = vector.load %arg9[%c0_84, %c3, %c0_85, %c0_86] : memref<1x8x8x128xf32, #tpu.memory_space<vmem>>, vector<1x1x8x128xf32>
    %72 = vector.shape_cast %71 : vector<1x1x8x128xf32> to vector<8x128xf32>
    %73 = vector.shape_cast %70 : vector<8x128xf32> to vector<1x1x8x128xf32>
    tpu.vector_store %arg9[%c0_84, %c3, %c0_85, %c0_86], %73 {strides = array<i32>} : memref<1x8x8x128xf32, #tpu.memory_space<vmem>>, vector<1x1x8x128xf32>,
    %c64 = arith.constant 64 : index
    %c0_87 = arith.constant 0 : index
    %74 = vector.load %arg10[%c64, %c0_87] : memref<128x128xf32, #tpu.memory_space<vmem>>, vector<8x128xf32>
    %75 = arith.addf %74, %53 : vector<8x128xf32>
    %c0_88 = arith.constant 0 : index
    %c4 = arith.constant 4 : index
    %c0_89 = arith.constant 0 : index
    %c0_90 = arith.constant 0 : index
    %76 = vector.load %arg9[%c0_88, %c4, %c0_89, %c0_90] : memref<1x8x8x128xf32, #tpu.memory_space<vmem>>, vector<1x1x8x128xf32>
    %77 = vector.shape_cast %76 : vector<1x1x8x128xf32> to vector<8x128xf32>
    %78 = vector.shape_cast %75 : vector<8x128xf32> to vector<1x1x8x128xf32>
    tpu.vector_store %arg9[%c0_88, %c4, %c0_89, %c0_90], %78 {strides = array<i32>} : memref<1x8x8x128xf32, #tpu.memory_space<vmem>>, vector<1x1x8x128xf32>,
    %c80 = arith.constant 80 : index
    %c0_91 = arith.constant 0 : index
    %79 = vector.load %arg10[%c80, %c0_91] : memref<128x128xf32, #tpu.memory_space<vmem>>, vector<8x128xf32>
    %80 = arith.addf %79, %53 : vector<8x128xf32>
    %c0_92 = arith.constant 0 : index
    %c5 = arith.constant 5 : index
    %c0_93 = arith.constant 0 : index
    %c0_94 = arith.constant 0 : index
    %81 = vector.load %arg9[%c0_92, %c5, %c0_93, %c0_94] : memref<1x8x8x128xf32, #tpu.memory_space<vmem>>, vector<1x1x8x128xf32>
    %82 = vector.shape_cast %81 : vector<1x1x8x128xf32> to vector<8x128xf32>
    %83 = vector.shape_cast %80 : vector<8x128xf32> to vector<1x1x8x128xf32>
    tpu.vector_store %arg9[%c0_92, %c5, %c0_93, %c0_94], %83 {strides = array<i32>} : memref<1x8x8x128xf32, #tpu.memory_space<vmem>>, vector<1x1x8x128xf32>,
    %c96 = arith.constant 96 : index
    %c0_95 = arith.constant 0 : index
    %84 = vector.load %arg10[%c96, %c0_95] : memref<128x128xf32, #tpu.memory_space<vmem>>, vector<8x128xf32>
    %85 = arith.addf %84, %53 : vector<8x128xf32>
    %c0_96 = arith.constant 0 : index
    %c6 = arith.constant 6 : index
    %c0_97 = arith.constant 0 : index
    %c0_98 = arith.constant 0 : index
    %86 = vector.load %arg9[%c0_96, %c6, %c0_97, %c0_98] : memref<1x8x8x128xf32, #tpu.memory_space<vmem>>, vector<1x1x8x128xf32>
    %87 = vector.shape_cast %86 : vector<1x1x8x128xf32> to vector<8x128xf32>
    %88 = vector.shape_cast %85 : vector<8x128xf32> to vector<1x1x8x128xf32>
    tpu.vector_store %arg9[%c0_96, %c6, %c0_97, %c0_98], %88 {strides = array<i32>} : memref<1x8x8x128xf32, #tpu.memory_space<vmem>>, vector<1x1x8x128xf32>,
    %c112_99 = arith.constant 112 : index
    %c0_100 = arith.constant 0 : index
    %89 = vector.load %arg10[%c112_99, %c0_100] : memref<128x128xf32, #tpu.memory_space<vmem>>, vector<8x128xf32>
    %90 = arith.addf %89, %53 : vector<8x128xf32>
    %c0_101 = arith.constant 0 : index
    %c7 = arith.constant 7 : index
    %c0_102 = arith.constant 0 : index
    %c0_103 = arith.constant 0 : index
    %91 = vector.load %arg9[%c0_101, %c7, %c0_102, %c0_103] : memref<1x8x8x128xf32, #tpu.memory_space<vmem>>, vector<1x1x8x128xf32>
    %92 = vector.shape_cast %91 : vector<1x1x8x128xf32> to vector<8x128xf32>
    %93 = vector.shape_cast %90 : vector<8x128xf32> to vector<1x1x8x128xf32>
    tpu.vector_store %arg9[%c0_101, %c7, %c0_102, %c0_103], %93 {strides = array<i32>} : memref<1x8x8x128xf32, #tpu.memory_space<vmem>>, vector<1x1x8x128xf32>,
    return
  }
  func.func @transform_0(%arg0: i32, %arg1: i32, %arg2: i32) -> (i32, i32, i32) {
    %c0_i32 = arith.constant 0 : i32
    %c0_i32_0 = arith.constant 0 : i32
    return %arg0, %arg1, %c0_i32 : i32, i32, i32
  }
  func.func @transform_1(%arg0: i32, %arg1: i32, %arg2: i32) -> (i32, i32, i32) {
    %c1_i32 = arith.constant 1 : i32
    %0 = arith.addi %arg1, %c1_i32 : i32
    %c8_i32 = arith.constant 8 : i32
    %1 = arith.muli %0, %c8_i32 : i32
    %c0_i32 = arith.constant 0 : i32
    %c0_i32_0 = arith.constant 0 : i32
    return %arg0, %1, %c0_i32 : i32, i32, i32
  }
  func.func @transform_2(%arg0: i32, %arg1: i32, %arg2: i32) -> (i32, i32) {
    %c0_i32 = arith.constant 0 : i32
    %c0_i32_0 = arith.constant 0 : i32
    return %c0_i32, %arg2 : i32, i32
  }
  func.func @transform_3(%arg0: i32, %arg1: i32, %arg2: i32) -> (i32, i32) {
    %c0_i32 = arith.constant 0 : i32
    %c0_i32_0 = arith.constant 0 : i32
    return %c0_i32, %arg2 : i32, i32
  }
  func.func @transform_4(%arg0: i32, %arg1: i32, %arg2: i32) -> (i32, i32, i32) {
    %c0_i32 = arith.constant 0 : i32
    %c0_i32_0 = arith.constant 0 : i32
    %c0_i32_1 = arith.constant 0 : i32
    return %c0_i32, %c0_i32_0, %arg2 : i32, i32, i32
  }
  func.func @transform_5(%arg0: i32, %arg1: i32, %arg2: i32) -> (i32, i32) {
    %c0_i32 = arith.constant 0 : i32
    %c0_i32_0 = arith.constant 0 : i32
    return %c0_i32, %arg2 : i32, i32
  }
  func.func @transform_6(%arg0: i32, %arg1: i32, %arg2: i32) -> (i32, i32, i32, i32) {
    %c0_i32 = arith.constant 0 : i32
    %c0_i32_0 = arith.constant 0 : i32
    return %arg0, %arg1, %c0_i32, %arg2 : i32, i32, i32, i32
  }
}

</mosaic_0001>

<llo_original>
// kernel: tpu_custom_call.1
$region0: #{tpu_custom_call.1}
  #allocation0 [shape = 'u32[]', space=smem, size = 0x4, offset = 0x4, fixed_abs, tag = 'smem constant byte address 0x4 - core index']
  #allocation1 [shape = 'u32[72,128]{1,0:T(1,128)}', space=vmem, size = 0x9000, scoped, tag = 'internal scratch']
  #allocation2 [shape = 'f32[128,128]{1,0:T(8,128)}', space=vmem, size = 0x10000, scoped, tag = 'scratch operand']
  %s0 = inlined_call_operand.vmem [shape: bf16[2,144,16], index: 0, kind: input, shape index: {}]
  %s1 = inlined_call_operand.vmem [shape: bf16[2,144,16], index: 1, kind: input, shape index: {}]
  %s2 = inlined_call_operand.vmem [shape: bf16[16,128], index: 2, kind: input, shape index: {}]
  %s3 = inlined_call_operand.vmem [shape: bf16[8,128], index: 3, kind: input, shape index: {}]
  %s4 = inlined_call_operand.vmem [shape: bf16[3,4,128], index: 4, kind: input, shape index: {}]
  %s5 = inlined_call_operand.vmem [shape: f32[1,128], index: 5, kind: input, shape index: {}]
  %s6 = inlined_call_operand.hbm [shape: f32[2,8,8,128], index: 6, kind: output, shape index: {}]
  %s7 = sld [smem:[#allocation0]]
  $region57: #{tpu_custom_call.1} parent=0
    _
  %s9 = ssub.s32 1, %s7
  %s10 = scalar_select 0, %s9, %s7
  $region1: #{tpu_custom_call.1} parent=0
    #allocation3 [shape = 'u8[65536]{0}', space=vmem, size = 0x10000, scoped, tag = 'output window, operand 0']
    #allocation4 [shape = 's32[2]{0}', space=sflag, size = 0x8, scoped, tag = 'scoped memory for tpu_custom_call.1']
    %11 = vsyncpa [#allocation4], 0
    %s12 = scalar_lea.sflag [#allocation4], 1
    %13 = vsyncpa %s12, 0
    loop: start=0, step=1, limit=4
    $region2: #{tpu_custom_call.1} parent=1 // loop_pre_header
      _
    $region3: #{tpu_custom_call.1} parent=1 // loop_header
      %s15 = sphi 0, %s19
      %p16 = scmp.ge.s32.totalorder %s15, 4
      %s22 = sphi 0, %s41
      %s23 = sphi 0, %s37
      %s24 = sphi 0, %s33
      %s25 = sphi 0, %s22
      %s26 = sphi 0, %s23
      %s27 = sphi 0, %s24
      %s28 = sphi 0, %s25
      %s29 = sphi 0, %s26
      %s30 = sphi 0, %s27
      %s46 = sphi 0, %s48
      %s49 = sphi 0, %s46
      %s50 = sphi 0, %s49
      %s66 = sphi 0, %s50
      %s78 = sphi 0, %s80
      %s81 = sphi 0, %s78
      %s82 = sphi 0, %s81
      %s98 = sphi 0, %s82
      %s104 = sphi 0, %s106
      %s107 = sphi 0, %s104
      %s108 = sphi 0, %s107
      %s124 = sphi 0, %s108
      %s130 = sphi 0, %s132
      %s133 = sphi 0, %s130
      %s134 = sphi 0, %s133
      %s150 = sphi 0, %s134
      %s156 = sphi 0, %s158
      %s159 = sphi 0, %s156
      %s160 = sphi 0, %s159
      %s176 = sphi 0, %s160
      %s182 = sphi 0, %s184
      %s185 = sphi 0, %s182
      %s186 = sphi 0, %s185
      %s202 = sphi 0, %s186
      %s212 = sphi 0, %s214
      %s215 = sphi 0, %s212
      %s216 = sphi 0, %s215
      %s232 = sphi 0, %s216
    $region4: #{tpu_custom_call.1} parent=1 // loop_header_branch
      %18 = sbr.rel (%p16) target = $region8
    $region5: #{tpu_custom_call.1} parent=1 // loop_body
      %s20 = ssub.s32 %s15, 1
      %s21 = ssub.s32 %s15, 2
      %s31 = sadd.s32 1, %s24
      %p32 = scmp.ge.s32.totalorder %s31, 1
      %s33 = scalar_select %p32, 0, %s31
      %s34 = sadd.s32 1, %s23
      %s35 = scalar_select %p32, %s34, %s23
      %p36 = scmp.ge.s32.totalorder %s35, 1
      %s37 = scalar_select %p36, 0, %s35
      %s38 = sadd.s32 1, %s22
      %s39 = scalar_select %p36, %s38, %s22
      %p40 = scmp.ge.s32.totalorder %s39, 2
      %s41 = scalar_select %p40, 0, %s39
      %s42 = ssub.s32 %s22, %s41
      %s43 = ssub.s32 %s23, %s37
      %s44 = sor.u32 %s42, %s43
      %p45 = scmp.eq.s32.totalorder %s44, 0
      %s47 = sadd.s32 %s46, 1
      %s48 = scalar_select %p45, %s46, %s47
      %p51 = pneg %p45
      %p52 = scmp.eq.s32.totalorder %s15, 1
      %p53 = por %p51, %p52
      %p54 = scmp.ne.s32.totalorder %s46, %s49
      %p55 = scmp.eq.s32.totalorder %s15, 0
      %p56 = por %p54, %p55
      %p57 = scmp.ne.s32.totalorder %s46, %s49
      %p58 = scmp.eq.s32.totalorder %s20, 1
      %p59 = por %p57, %p58
      %p60 = scmp.ne.s32.totalorder %s49, %s50
      %p61 = scmp.eq.s32.totalorder %s20, 0
      %p62 = por %p60, %p61
      %p63 = scmp.ne.s32.totalorder %s49, %s50
      %p64 = scmp.eq.s32.totalorder %s21, 1
      %p65 = por %p63, %p64
      %p67 = scmp.ne.s32.totalorder %s50, %s66
      %p68 = scmp.eq.s32.totalorder %s21, 0
      %p69 = por %p67, %p68
      %s70 = sadd.s32 %s23, 1
      %s71 = smul.u32 %s70, 8
      %s72 = sadd.s32 %s37, 1
      %s73 = smul.u32 %s72, 8
      %s74 = ssub.s32 %s22, %s41
      %s75 = ssub.s32 %s71, %s73
      %s76 = sor.u32 %s74, %s75
      %p77 = scmp.eq.s32.totalorder %s76, 0
      %s79 = sadd.s32 %s78, 1
      %s80 = scalar_select %p77, %s78, %s79
      %p83 = pneg %p77
      %p84 = scmp.eq.s32.totalorder %s15, 1
      %p85 = por %p83, %p84
      %p86 = scmp.ne.s32.totalorder %s78, %s81
      %p87 = scmp.eq.s32.totalorder %s15, 0
      %p88 = por %p86, %p87
      %p89 = scmp.ne.s32.totalorder %s78, %s81
      %p90 = scmp.eq.s32.totalorder %s20, 1
      %p91 = por %p89, %p90
      %p92 = scmp.ne.s32.totalorder %s81, %s82
      %p93 = scmp.eq.s32.totalorder %s20, 0
      %p94 = por %p92, %p93
      %p95 = scmp.ne.s32.totalorder %s81, %s82
      %p96 = scmp.eq.s32.totalorder %s21, 1
      %p97 = por %p95, %p96
      %p99 = scmp.ne.s32.totalorder %s82, %s98
      %p100 = scmp.eq.s32.totalorder %s21, 0
      %p101 = por %p99, %p100
      %s102 = ssub.s32 %s24, %s33
      %p103 = scmp.eq.s32.totalorder %s102, 0
      %s105 = sadd.s32 %s104, 1
      %s106 = scalar_select %p103, %s104, %s105
      %p109 = pneg %p103
      %p110 = scmp.eq.s32.totalorder %s15, 1
      %p111 = por %p109, %p110
      %p112 = scmp.ne.s32.totalorder %s104, %s107
      %p113 = scmp.eq.s32.totalorder %s15, 0
      %p114 = por %p112, %p113
      %p115 = scmp.ne.s32.totalorder %s104, %s107
      %p116 = scmp.eq.s32.totalorder %s20, 1
      %p117 = por %p115, %p116
      %p118 = scmp.ne.s32.totalorder %s107, %s108
      %p119 = scmp.eq.s32.totalorder %s20, 0
      %p120 = por %p118, %p119
      %p121 = scmp.ne.s32.totalorder %s107, %s108
      %p122 = scmp.eq.s32.totalorder %s21, 1
      %p123 = por %p121, %p122
      %p125 = scmp.ne.s32.totalorder %s108, %s124
      %p126 = scmp.eq.s32.totalorder %s21, 0
      %p127 = por %p125, %p126
      %s128 = ssub.s32 %s24, %s33
      %p129 = scmp.eq.s32.totalorder %s128, 0
      %s131 = sadd.s32 %s130, 1
      %s132 = scalar_select %p129, %s130, %s131
      %p135 = pneg %p129
      %p136 = scmp.eq.s32.totalorder %s15, 1
      %p137 = por %p135, %p136
      %p138 = scmp.ne.s32.totalorder %s130, %s133
      %p139 = scmp.eq.s32.totalorder %s15, 0
      %p140 = por %p138, %p139
      %p141 = scmp.ne.s32.totalorder %s130, %s133
      %p142 = scmp.eq.s32.totalorder %s20, 1
      %p143 = por %p141, %p142
      %p144 = scmp.ne.s32.totalorder %s133, %s134
      %p145 = scmp.eq.s32.totalorder %s20, 0
      %p146 = por %p144, %p145
      %p147 = scmp.ne.s32.totalorder %s133, %s134
      %p148 = scmp.eq.s32.totalorder %s21, 1
      %p149 = por %p147, %p148
      %p151 = scmp.ne.s32.totalorder %s134, %s150
      %p152 = scmp.eq.s32.totalorder %s21, 0
      %p153 = por %p151, %p152
      %s154 = ssub.s32 %s24, %s33
      %p155 = scmp.eq.s32.totalorder %s154, 0
      %s157 = sadd.s32 %s156, 1
      %s158 = scalar_select %p155, %s156, %s157
      %p161 = pneg %p155
      %p162 = scmp.eq.s32.totalorder %s15, 1
      %p163 = por %p161, %p162
      %p164 = scmp.ne.s32.totalorder %s156, %s159
      %p165 = scmp.eq.s32.totalorder %s15, 0
      %p166 = por %p164, %p165
      %p167 = scmp.ne.s32.totalorder %s156, %s159
      %p168 = scmp.eq.s32.totalorder %s20, 1
      %p169 = por %p167, %p168
      %p170 = scmp.ne.s32.totalorder %s159, %s160
      %p171 = scmp.eq.s32.totalorder %s20, 0
      %p172 = por %p170, %p171
      %p173 = scmp.ne.s32.totalorder %s159, %s160
      %p174 = scmp.eq.s32.totalorder %s21, 1
      %p175 = por %p173, %p174
      %p177 = scmp.ne.s32.totalorder %s160, %s176
      %p178 = scmp.eq.s32.totalorder %s21, 0
      %p179 = por %p177, %p178
      %s180 = ssub.s32 %s24, %s33
      %p181 = scmp.eq.s32.totalorder %s180, 0
      %s183 = sadd.s32 %s182, 1
      %s184 = scalar_select %p181, %s182, %s183
      %p187 = pneg %p181
      %p188 = scmp.eq.s32.totalorder %s15, 1
      %p189 = por %p187, %p188
      %p190 = scmp.ne.s32.totalorder %s182, %s185
      %p191 = scmp.eq.s32.totalorder %s15, 0
      %p192 = por %p190, %p191
      %p193 = scmp.ne.s32.totalorder %s182, %s185
      %p194 = scmp.eq.s32.totalorder %s20, 1
      %p195 = por %p193, %p194
      %p196 = scmp.ne.s32.totalorder %s185, %s186
      %p197 = scmp.eq.s32.totalorder %s20, 0
      %p198 = por %p196, %p197
      %p199 = scmp.ne.s32.totalorder %s185, %s186
      %p200 = scmp.eq.s32.totalorder %s21, 1
      %p201 = por %p199, %p200
      %p203 = scmp.ne.s32.totalorder %s186, %s202
      %p204 = scmp.eq.s32.totalorder %s21, 0
      %p205 = por %p203, %p204
      %s206 = ssub.s32 %s22, %s41
      %s207 = ssub.s32 %s23, %s37
      %s208 = sor.u32 %s206, %s207
      %s209 = ssub.s32 %s24, %s33
      %s210 = sor.u32 %s208, %s209
      %p211 = scmp.eq.s32.totalorder %s210, 0
      %s213 = sadd.s32 %s212, 1
      %s214 = scalar_select %p211, %s212, %s213
      %p217 = pneg %p211
      %p218 = scmp.eq.s32.totalorder %s15, 1
      %p219 = por %p217, %p218
      %p220 = scmp.ne.s32.totalorder %s212, %s215
      %p221 = scmp.eq.s32.totalorder %s15, 0
      %p222 = por %p220, %p221
      %p223 = scmp.ne.s32.totalorder %s212, %s215
      %p224 = scmp.eq.s32.totalorder %s20, 1
      %p225 = por %p223, %p224
      %p226 = scmp.ne.s32.totalorder %s215, %s216
      %p227 = scmp.eq.s32.totalorder %s20, 0
      %p228 = por %p226, %p227
      %p229 = scmp.ne.s32.totalorder %s215, %s216
      %p230 = scmp.eq.s32.totalorder %s21, 1
      %p231 = por %p229, %p230
      %p233 = scmp.ne.s32.totalorder %s216, %s232
      %p234 = scmp.eq.s32.totalorder %s21, 0
      %p235 = por %p233, %p234
      %p236 = scmp.le.s32.totalorder 1, %s15
      %p237 = scmp.lt.s32.totalorder %s15, 3
      %p238 = pnand %p236, %p237
      %p239 = pneg %p238
      // Predicated region
      $region9: #{tpu_custom_call.1} parent=5 // pred_check
        _
      $region10: #{tpu_custom_call.1} parent=5 // pred_check_branch
        %241 = sbr.rel (%p238) target = $region12
      $region11: #{tpu_custom_call.1} parent=5 // pred_region
        %s242 = ssub.s32 %s15, 1
        // Predicated region
        $region13: #{tpu_custom_call.1} parent=11 // pred_check
          %p243 = pneg %p120
        $region14: #{tpu_custom_call.1} parent=11 // pred_check_branch
          %245 = sbr.rel (%p243) target = $region16
        $region15: #{tpu_custom_call.1} parent=11 // pred_region
          %p246 = scmp.lt.s32.totalorder %s27, 0
          %s247 = scalar_select %p246, %s27, 0
          %s248 = smul.addr %s247, 4
          %s249 = scalar_lea.vmem %s2, %s248
        $region16: #{tpu_custom_call.1} parent=11 // pred_fallthru
          _
        // Predicated region
        $region17: #{tpu_custom_call.1} parent=11 // pred_check
          %p250 = pneg %p146
        $region18: #{tpu_custom_call.1} parent=11 // pred_check_branch
          %252 = sbr.rel (%p250) target = $region20
        $region19: #{tpu_custom_call.1} parent=11 // pred_region
          %p253 = scmp.lt.s32.totalorder %s27, 0
          %s254 = scalar_select %p253, %s27, 0
          %s255 = smul.addr %s254, 4
          %s256 = scalar_lea.vmem %s3, %s255
        $region20: #{tpu_custom_call.1} parent=11 // pred_fallthru
          _
        // Predicated region
        $region21: #{tpu_custom_call.1} parent=11 // pred_check
          %p257 = pneg %p172
        $region22: #{tpu_custom_call.1} parent=11 // pred_check_branch
          %259 = sbr.rel (%p257) target = $region24
        $region23: #{tpu_custom_call.1} parent=11 // pred_region
          %p260 = scmp.lt.s32.totalorder %s27, 0
          %s261 = scalar_select %p260, %s27, 0
          %s262 = smul.addr %s261, 2
          %s263 = scalar_lea.vmem %s4, %s262
        $region24: #{tpu_custom_call.1} parent=11 // pred_fallthru
          _
        // Predicated region
        $region25: #{tpu_custom_call.1} parent=11 // pred_check
          %p264 = pneg %p198
        $region26: #{tpu_custom_call.1} parent=11 // pred_check_branch
          %266 = sbr.rel (%p264) target = $region28
        $region27: #{tpu_custom_call.1} parent=11 // pred_region
          %p267 = scmp.lt.s32.totalorder %s27, 0
          %s268 = scalar_select %p267, %s27, 0
          %s269 = scalar_lea.vmem %s5, %s268
        $region28: #{tpu_custom_call.1} parent=11 // pred_fallthru
          _
      $region12: #{tpu_custom_call.1} parent=5 // pred_fallthru
        _
      %p270 = scmp.lt.s32.totalorder %s15, 2
      // Predicated region
      $region29: #{tpu_custom_call.1} parent=5 // pred_check
        %p271 = pneg %p270
      $region30: #{tpu_custom_call.1} parent=5 // pred_check_branch
        %273 = sbr.rel (%p271) target = $region32
      $region31: #{tpu_custom_call.1} parent=5 // pred_region
        // Predicated region
        $region33: #{tpu_custom_call.1} parent=31 // pred_check
          %p274 = pneg %p56
        $region34: #{tpu_custom_call.1} parent=31 // pred_check_branch
          %276 = sbr.rel (%p274) target = $region36
        $region35: #{tpu_custom_call.1} parent=31 // pred_region
          %s277 = smul.u32 16, %s23
          %s278 = ssub.s32 18, %s277
          %p279 = scmp.lt.s32.totalorder %s278, 16
          %s280 = scalar_select %p279, %s278, 16
          %s281 = smul.u32 4, %s280
          %p282 = scmp.lt.s32.totalorder %s22, 1
          %s283 = scalar_select %p282, %s22, 1
          %p284 = scmp.lt.s32.totalorder %s277, 17
          %s285 = scalar_select %p284, %s277, 17
          %s286 = smul.addr %s283, 18
          %s287 = sadd.s32 %s285, %s286
          %s288 = smul.addr %s287, 4
          %s289 = scalar_lea.vmem %s0, %s288
          %s290 = smul.u32 16, %s23
          %s291 = ssub.s32 18, %s290
          %p292 = scmp.lt.s32.totalorder %s291, 16
          %s293 = scalar_select %p292, %s291, 16
          %s294 = smul.u32 4, %s293
        $region36: #{tpu_custom_call.1} parent=31 // pred_fallthru
          _
        // Predicated region
        $region37: #{tpu_custom_call.1} parent=31 // pred_check
          %p295 = pneg %p88
        $region38: #{tpu_custom_call.1} parent=31 // pred_check_branch
          %297 = sbr.rel (%p295) target = $region40
        $region39: #{tpu_custom_call.1} parent=31 // pred_region
          %s298 = sadd.s32 %s23, 1
          %s299 = smul.u32 %s298, 8
          %s300 = smul.u32 2, %s299
          %p301 = scmp.lt.s32.totalorder %s22, 1
          %s302 = scalar_select %p301, %s22, 1
          %p303 = scmp.lt.s32.totalorder %s300, 17
          %s304 = scalar_select %p303, %s300, 17
          %s305 = smul.addr %s302, 18
          %s306 = sadd.s32 %s304, %s305
          %s307 = smul.addr %s306, 4
          %s308 = scalar_lea.vmem %s1, %s307
          %s309 = sadd.s32 %s23, 1
          %s310 = smul.u32 %s309, 8
          %s311 = smul.u32 2, %s310
        $region40: #{tpu_custom_call.1} parent=31 // pred_fallthru
          _
      $region32: #{tpu_custom_call.1} parent=5 // pred_fallthru
        _
      %p312 = scmp.le.s32.totalorder 1, %s15
      %p313 = scmp.lt.s32.totalorder %s15, 3
      %p314 = pnand %p312, %p313
      %p315 = pneg %p314
      // Predicated region
      $region41: #{tpu_custom_call.1} parent=5 // pred_check
        _
      $region42: #{tpu_custom_call.1} parent=5 // pred_check_branch
        %317 = sbr.rel (%p314) target = $region44
      $region43: #{tpu_custom_call.1} parent=5 // pred_region
        %s318 = ssub.s32 %s15, 1
        %s319 = smul.u32 16, %s26
        %s320 = ssub.s32 18, %s319
        %p321 = scmp.lt.s32.totalorder %s320, 16
        %s322 = scalar_select %p321, %s320, 16
        %s323 = smul.u32 4, %s322
        %p324 = scmp.lt.s32.totalorder %s25, 1
        %s325 = scalar_select %p324, %s25, 1
        %p326 = scmp.lt.s32.totalorder %s319, 17
        %s327 = scalar_select %p326, %s319, 17
        %s328 = smul.addr %s325, 18
        %s329 = sadd.s32 %s327, %s328
        %s330 = smul.addr %s329, 4
        %s331 = scalar_lea.vmem %s0, %s330
        %p332 = pneg %p62
        %p333 = pneg %p59
        %s334 = sadd.s32 %s26, 1
        %s335 = smul.u32 %s334, 8
        %s336 = smul.u32 2, %s335
        %p337 = scmp.lt.s32.totalorder %s25, 1
        %s338 = scalar_select %p337, %s25, 1
        %p339 = scmp.lt.s32.totalorder %s336, 17
        %s340 = scalar_select %p339, %s336, 17
        %s341 = smul.addr %s338, 18
        %s342 = sadd.s32 %s340, %s341
        %s343 = smul.addr %s342, 4
        %s344 = scalar_lea.vmem %s1, %s343
        %p345 = pneg %p94
        %p346 = pneg %p91
        %p347 = scmp.lt.s32.totalorder %s27, 0
        %s348 = scalar_select %p347, %s27, 0
        %s349 = smul.addr %s348, 4
        %s350 = scalar_lea.vmem %s2, %s349
        %p351 = pneg %p120
        %p352 = pneg %p117
        %p353 = scmp.lt.s32.totalorder %s27, 0
        %s354 = scalar_select %p353, %s27, 0
        %s355 = smul.addr %s354, 4
        %s356 = scalar_lea.vmem %s3, %s355
        %p357 = pneg %p146
        %p358 = pneg %p143
        %p359 = scmp.lt.s32.totalorder %s27, 0
        %s360 = scalar_select %p359, %s27, 0
        %s361 = smul.addr %s360, 2
        %s362 = scalar_lea.vmem %s4, %s361
        %p363 = pneg %p172
        %p364 = pneg %p169
        %p365 = scmp.lt.s32.totalorder %s27, 0
        %s366 = scalar_select %p365, %s27, 0
        %s367 = scalar_lea.vmem %s5, %s366
        %p368 = pneg %p198
        %p369 = pneg %p195
        %p370 = pneg %p228
        %p371 = pneg %p225
        %s372 = sand.u32 %s215, 1
        %s373 = scalar_lea.sflag [#allocation4], %s372
        %s374 = sand.u32 %s215, 1
        %s375 = smul.addr %s374, 64
        %s376 = scalar_lea.vmem [#allocation3], %s375
        %s377 = smul.u32 16, %s26
        %s378 = ssub.s32 18, %s377
        %p379 = scmp.lt.s32.totalorder %s378, 16
        %s380 = scalar_select %p379, %s378, 16
        %s381 = smul.u32 4, %s380
        %p382 = scmp.lt.s32.totalorder %s25, 1
        %s383 = scalar_select %p382, %s25, 1
        %p384 = scmp.lt.s32.totalorder %s377, 17
        %s385 = scalar_select %p384, %s377, 17
        %s386 = smul.addr %s383, 18
        %s387 = sadd.s32 %s385, %s386
        %s388 = smul.addr %s387, 4
        %s389 = scalar_lea.vmem %s0, %s388
        %s390 = smul.u32 16, %s26
        %s391 = ssub.s32 18, %s390
        %p392 = scmp.lt.s32.totalorder %s391, 16
        %s393 = scalar_select %p392, %s391, 16
        %s394 = smul.u32 4, %s393
        %s395 = sadd.s32 %s26, 1
        %s396 = smul.u32 %s395, 8
        %s397 = smul.u32 2, %s396
        %p398 = scmp.lt.s32.totalorder %s25, 1
        %s399 = scalar_select %p398, %s25, 1
        %p400 = scmp.lt.s32.totalorder %s397, 17
        %s401 = scalar_select %p400, %s397, 17
        %s402 = smul.addr %s399, 18
        %s403 = sadd.s32 %s401, %s402
        %s404 = smul.addr %s403, 4
        %s405 = scalar_lea.vmem %s1, %s404
        %s406 = sadd.s32 %s26, 1
        %s407 = smul.u32 %s406, 8
        %s408 = smul.u32 2, %s407
        %p409 = scmp.lt.s32.totalorder %s27, 0
        %s410 = scalar_select %p409, %s27, 0
        %s411 = smul.addr %s410, 4
        %s412 = scalar_lea.vmem %s2, %s411
        %p413 = scmp.lt.s32.totalorder %s27, 0
        %s414 = scalar_select %p413, %s27, 0
        %s415 = smul.addr %s414, 4
        %s416 = scalar_lea.vmem %s3, %s415
        %p417 = scmp.lt.s32.totalorder %s27, 0
        %s418 = scalar_select %p417, %s27, 0
        %s419 = smul.addr %s418, 2
        %s420 = scalar_lea.vmem %s4, %s419
        %p421 = scmp.lt.s32.totalorder %s27, 0
        %s422 = scalar_select %p421, %s27, 0
        %s423 = scalar_lea.vmem %s5, %s422
        %s424 = smul.u32 8, %s26
        %v426 = vld [vmem:[%s389] sm:$0xf]
        %v427 = vld [vmem:[%s389 + $0x4] sm:$0xf]
        %v428 = vld [vmem:[%s389 + $0x8] sm:$0xf]
        %v429 = vld [vmem:[%s389 + $0xc] sm:$0xf]
        %v430 = vld [vmem:[%s389 + $0x10] sm:$0xf]
        %v431 = vld [vmem:[%s389 + $0x14] sm:$0xf]
        %v432 = vld [vmem:[%s389 + $0x18] sm:$0xf]
        %v433 = vld [vmem:[%s389 + $0x1c] sm:$0xf]
        %v434 = vld [vmem:[%s389 + $0x20] sm:$0xf]
        %v435 = vld [vmem:[%s389 + $0x24] sm:$0xf]
        %v436 = vld [vmem:[%s389 + $0x28] sm:$0xf]
        %v437 = vld [vmem:[%s389 + $0x2c] sm:$0xf]
        %v438 = vld [vmem:[%s389 + $0x30] sm:$0xf]
        %v439 = vld [vmem:[%s389 + $0x34] sm:$0xf]
        %v440 = vld [vmem:[%s389 + $0x38] sm:$0xf]
        %v441 = vld [vmem:[%s389 + $0x3c] sm:$0xf]
        %v442 = vld [vmem:[%s412] sm:$0xf]
        %v443 = vld [vmem:[%s412 + $0x4] sm:$0xf]
        %v460 = vunpack.c.l.b16 %v426
        %v461 = vunpack.c.l.b16 %v427
        %v462 = vunpack.c.l.b16 %v428
        %v463 = vunpack.c.l.b16 %v429
        %v464 = vunpack.c.l.b16 %v430
        %v465 = vunpack.c.l.b16 %v431
        %v466 = vunpack.c.l.b16 %v432
        %v467 = vunpack.c.l.b16 %v433
        %v468 = vunpack.c.l.b16 %v434
        %v469 = vunpack.c.l.b16 %v435
        %v470 = vunpack.c.l.b16 %v436
        %v471 = vunpack.c.l.b16 %v437
        %v472 = vunpack.c.l.b16 %v438
        %v473 = vunpack.c.l.b16 %v439
        %v474 = vunpack.c.l.b16 %v440
        %v475 = vunpack.c.l.b16 %v441
        %v476 = vpack.c.b16 %v461, %v460
        %v477 = vpack.c.b16 %v463, %v462
        %v478 = vpack.c.b16 %v465, %v464
        %v479 = vpack.c.b16 %v467, %v466
        %v480 = vpack.c.b16 %v469, %v468
        %v481 = vpack.c.b16 %v471, %v470
        %v482 = vpack.c.b16 %v473, %v472
        %v483 = vpack.c.b16 %v475, %v474
        %v486 = vunpack.c.l.b16 %v442
        %v487 = vunpack.c.l.b16 %v443
        %v488 = vpack.c.b16 %v487, %v486
        %vm490 = vcmask 130048
        %v492 = vsel %vm490, %v476, 0
        %v495 = vsel %vm490, %v477, 0
        %v498 = vsel %vm490, %v478, 0
        %v501 = vsel %vm490, %v479, 0
        %v504 = vsel %vm490, %v480, 0
        %v507 = vsel %vm490, %v481, 0
        %v510 = vsel %vm490, %v482, 0
        %v513 = vsel %vm490, %v483, 0
        %515 = vmatpush.bf16.msra.mxu0 0
        %516 = vmatpush.bf16.msra.mxu0 0
        %517 = vmatpush.bf16.msra.mxu0 0
        %518 = vmatpush.bf16.msra.mxu0 0
        %519 = vmatpush.bf16.msra.mxu0 0
        %520 = vmatpush.bf16.msra.mxu0 0
        %521 = vmatpush.bf16.msra.mxu0 0
        %522 = vmatpush.bf16.msra.mxu0 %v488
        %523 = vmatmul.bf16.gmra.mxu0 %v492
        %v524 = vpop.f32.mrf.mxu0
        %v525 = vadd.f32 0.0, %v524
        %v526 = vpop.f32.mrf.mxu0
        %v527 = vadd.f32 0.0, %v526
        %528 = vmatmul.bf16.gmra.mxu0 %v495
        %v529 = vpop.f32.mrf.mxu0
        %v530 = vadd.f32 0.0, %v529
        %v531 = vpop.f32.mrf.mxu0
        %v532 = vadd.f32 0.0, %v531
        %533 = vmatmul.bf16.gmra.mxu0 %v498
        %v534 = vpop.f32.mrf.mxu0
        %v535 = vadd.f32 0.0, %v534
        %v536 = vpop.f32.mrf.mxu0
        %v537 = vadd.f32 0.0, %v536
        %538 = vmatmul.bf16.gmra.mxu0 %v501
        %v539 = vpop.f32.mrf.mxu0
        %v540 = vadd.f32 0.0, %v539
        %v541 = vpop.f32.mrf.mxu0
        %v542 = vadd.f32 0.0, %v541
        %543 = vmatmul.bf16.gmra.mxu0 %v504
        %v544 = vpop.f32.mrf.mxu0
        %v545 = vadd.f32 0.0, %v544
        %v546 = vpop.f32.mrf.mxu0
        %v547 = vadd.f32 0.0, %v546
        %548 = vmatmul.bf16.gmra.mxu0 %v507
        %v549 = vpop.f32.mrf.mxu0
        %v550 = vadd.f32 0.0, %v549
        %v551 = vpop.f32.mrf.mxu0
        %v552 = vadd.f32 0.0, %v551
        %553 = vmatmul.bf16.gmra.mxu0 %v510
        %v554 = vpop.f32.mrf.mxu0
        %v555 = vadd.f32 0.0, %v554
        %v556 = vpop.f32.mrf.mxu0
        %v557 = vadd.f32 0.0, %v556
        %558 = vmatmul.bf16.gmra.mxu0 %v513
        %v559 = vpop.f32.mrf.mxu0
        %v560 = vadd.f32 0.0, %v559
        %v561 = vpop.f32.mrf.mxu0
        %v562 = vadd.f32 0.0, %v561
        %563 = vdwg.mxu0
        %564 = vst [vmem:[#allocation2] sm:$0xff] %v525
        %565 = vst [vmem:[#allocation2 + $0x8] sm:$0xff] %v527
        %566 = vst [vmem:[#allocation2 + $0x10] sm:$0xff] %v530
        %567 = vst [vmem:[#allocation2 + $0x18] sm:$0xff] %v532
        %568 = vst [vmem:[#allocation2 + $0x20] sm:$0xff] %v535
        %569 = vst [vmem:[#allocation2 + $0x28] sm:$0xff] %v537
        %570 = vst [vmem:[#allocation2 + $0x30] sm:$0xff] %v540
        %571 = vst [vmem:[#allocation2 + $0x38] sm:$0xff] %v542
        %572 = vst [vmem:[#allocation2 + $0x40] sm:$0xff] %v545
        %573 = vst [vmem:[#allocation2 + $0x48] sm:$0xff] %v547
        %574 = vst [vmem:[#allocation2 + $0x50] sm:$0xff] %v550
        %575 = vst [vmem:[#allocation2 + $0x58] sm:$0xff] %v552
        %576 = vst [vmem:[#allocation2 + $0x60] sm:$0xff] %v555
        %577 = vst [vmem:[#allocation2 + $0x68] sm:$0xff] %v557
        %578 = vst [vmem:[#allocation2 + $0x70] sm:$0xff] %v560
        %579 = vst [vmem:[#allocation2 + $0x78] sm:$0xff] %v562
        %v580 = vld [vmem:[%s389] sm:$0xf]
        %v581 = vld [vmem:[%s389 + $0x4] sm:$0xf]
        %v582 = vld [vmem:[%s389 + $0x8] sm:$0xf]
        %v583 = vld [vmem:[%s389 + $0xc] sm:$0xf]
        %v584 = vld [vmem:[%s389 + $0x10] sm:$0xf]
        %v585 = vld [vmem:[%s389 + $0x14] sm:$0xf]
        %v586 = vld [vmem:[%s389 + $0x18] sm:$0xf]
        %v587 = vld [vmem:[%s389 + $0x1c] sm:$0xf]
        %v588 = vld [vmem:[%s389 + $0x20] sm:$0xf]
        %v589 = vld [vmem:[%s389 + $0x24] sm:$0xf]
        %v590 = vld [vmem:[%s389 + $0x28] sm:$0xf]
        %v591 = vld [vmem:[%s389 + $0x2c] sm:$0xf]
        %v592 = vld [vmem:[%s389 + $0x30] sm:$0xf]
        %v593 = vld [vmem:[%s389 + $0x34] sm:$0xf]
        %v594 = vld [vmem:[%s389 + $0x38] sm:$0xf]
        %v595 = vld [vmem:[%s389 + $0x3c] sm:$0xf]
        %v596 = vld [vmem:[#allocation2] sm:$0xff]
        %v597 = vld [vmem:[#allocation2 + $0x8] sm:$0xff]
        %v598 = vld [vmem:[#allocation2 + $0x10] sm:$0xff]
        %v599 = vld [vmem:[#allocation2 + $0x18] sm:$0xff]
        %v600 = vld [vmem:[#allocation2 + $0x20] sm:$0xff]
        %v601 = vld [vmem:[#allocation2 + $0x28] sm:$0xff]
        %v602 = vld [vmem:[#allocation2 + $0x30] sm:$0xff]
        %v603 = vld [vmem:[#allocation2 + $0x38] sm:$0xff]
        %v604 = vld [vmem:[#allocation2 + $0x40] sm:$0xff]
        %v605 = vld [vmem:[#allocation2 + $0x48] sm:$0xff]
        %v606 = vld [vmem:[#allocation2 + $0x50] sm:$0xff]
        %v607 = vld [vmem:[#allocation2 + $0x58] sm:$0xff]
        %v608 = vld [vmem:[#allocation2 + $0x60] sm:$0xff]
        %v609 = vld [vmem:[#allocation2 + $0x68] sm:$0xff]
        %v610 = vld [vmem:[#allocation2 + $0x70] sm:$0xff]
        %v611 = vld [vmem:[#allocation2 + $0x78] sm:$0x7f]
        %v612 = vld [vmem:[%s420] sm:$0x3]
        %v629 = vunpack.c.l.b16 %v580
        %v630 = vunpack.c.l.b16 %v581
        %v631 = vunpack.c.l.b16 %v582
        %v632 = vunpack.c.l.b16 %v583
        %v633 = vunpack.c.l.b16 %v584
        %v634 = vunpack.c.l.b16 %v585
        %v635 = vunpack.c.l.b16 %v586
        %v636 = vunpack.c.l.b16 %v587
        %v637 = vunpack.c.l.b16 %v588
        %v638 = vunpack.c.l.b16 %v589
        %v639 = vunpack.c.l.b16 %v590
        %v640 = vunpack.c.l.b16 %v591
        %v641 = vunpack.c.l.b16 %v592
        %v642 = vunpack.c.l.b16 %v593
        %v643 = vunpack.c.l.b16 %v594
        %v644 = vunpack.c.l.b16 %v595
        %v645 = vpack.c.b16 %v630, %v629
        %v646 = vpack.c.b16 %v632, %v631
        %v647 = vpack.c.b16 %v634, %v633
        %v648 = vpack.c.b16 %v636, %v635
        %v649 = vpack.c.b16 %v638, %v637
        %v650 = vpack.c.b16 %v640, %v639
        %v651 = vpack.c.b16 %v642, %v641
        %v652 = vpack.c.b16 %v644, %v643
        %vm653 = vsmask.f32 7424
        %v655 = vshrl.u32 %v645, 16
        %v657 = vshll.u32 %v645, 16
        %v659 = vrot.slane %v657, 1
        %v660 = vor.u32 %v655, %v659
        %v662 = vshll.u32 %v646, 16
        %v664 = vrot.slane %v662, 1
        %v665 = vsel %vm653, %v660, %v664
        %v666 = vshrl.u32 %v646, 16
        %v668 = vor.u32 %v666, %v664
        %v670 = vshll.u32 %v647, 16
        %v672 = vrot.slane %v670, 1
        %v673 = vsel %vm653, %v668, %v672
        %v674 = vshrl.u32 %v647, 16
        %v676 = vor.u32 %v674, %v672
        %v678 = vshll.u32 %v648, 16
        %v680 = vrot.slane %v678, 1
        %v681 = vsel %vm653, %v676, %v680
        %v682 = vshrl.u32 %v648, 16
        %v684 = vor.u32 %v682, %v680
        %v686 = vshll.u32 %v649, 16
        %v688 = vrot.slane %v686, 1
        %v689 = vsel %vm653, %v684, %v688
        %v690 = vshrl.u32 %v649, 16
        %v692 = vor.u32 %v690, %v688
        %v694 = vshll.u32 %v650, 16
        %v696 = vrot.slane %v694, 1
        %v697 = vsel %vm653, %v692, %v696
        %v698 = vshrl.u32 %v650, 16
        %v700 = vor.u32 %v698, %v696
        %v702 = vshll.u32 %v651, 16
        %v704 = vrot.slane %v702, 1
        %v705 = vsel %vm653, %v700, %v704
        %v706 = vshrl.u32 %v651, 16
        %v708 = vor.u32 %v706, %v704
        %v710 = vshll.u32 %v652, 16
        %v712 = vrot.slane %v710, 1
        %v713 = vsel %vm653, %v708, %v712
        %v714 = vshrl.u32 %v652, 16
        %v716 = vor.u32 %v714, %v712
        %vm717 = vcmask 31744
        %v719 = vsel %vm717, %v665, 0
        %v722 = vsel %vm717, %v673, 0
        %v725 = vsel %vm717, %v681, 0
        %v728 = vsel %vm717, %v689, 0
        %v731 = vsel %vm717, %v697, 0
        %v734 = vsel %vm717, %v705, 0
        %v737 = vsel %vm717, %v713, 0
        %v740 = vsel %vm717, %v716, 0
        %vm742 = vcmask 1041408
        %v744 = vsel %vm742, %v612, 0
        %746 = vmatpush.bf16.msra.mxu0 0
        %747 = vmatpush.bf16.msra.mxu0 0
        %748 = vmatpush.bf16.msra.mxu0 0
        %749 = vmatpush.bf16.msra.mxu0 0
        %750 = vmatpush.bf16.msra.mxu0 0
        %751 = vmatpush.bf16.msra.mxu0 0
        %752 = vmatpush.bf16.msra.mxu0 0
        %753 = vmatpush.bf16.msra.mxu0 %v744
        %754 = vmatmul.bf16.gmra.mxu0 %v719
        %v755 = vpop.f32.mrf.mxu0
        %v756 = vadd.f32 0.0, %v755
        %v757 = vpop.f32.mrf.mxu0
        %v758 = vadd.f32 0.0, %v757
        %759 = vmatmul.bf16.gmra.mxu0 %v722
        %v760 = vpop.f32.mrf.mxu0
        %v761 = vadd.f32 0.0, %v760
        %v762 = vpop.f32.mrf.mxu0
        %v763 = vadd.f32 0.0, %v762
        %764 = vmatmul.bf16.gmra.mxu0 %v725
        %v765 = vpop.f32.mrf.mxu0
        %v766 = vadd.f32 0.0, %v765
        %v767 = vpop.f32.mrf.mxu0
        %v768 = vadd.f32 0.0, %v767
        %769 = vmatmul.bf16.gmra.mxu0 %v728
        %v770 = vpop.f32.mrf.mxu0
        %v771 = vadd.f32 0.0, %v770
        %v772 = vpop.f32.mrf.mxu0
        %v773 = vadd.f32 0.0, %v772
        %774 = vmatmul.bf16.gmra.mxu0 %v731
        %v775 = vpop.f32.mrf.mxu0
        %v776 = vadd.f32 0.0, %v775
        %v777 = vpop.f32.mrf.mxu0
        %v778 = vadd.f32 0.0, %v777
        %779 = vmatmul.bf16.gmra.mxu0 %v734
        %v780 = vpop.f32.mrf.mxu0
        %v781 = vadd.f32 0.0, %v780
        %v782 = vpop.f32.mrf.mxu0
        %v783 = vadd.f32 0.0, %v782
        %784 = vmatmul.bf16.gmra.mxu0 %v737
        %v785 = vpop.f32.mrf.mxu0
        %v786 = vadd.f32 0.0, %v785
        %v787 = vpop.f32.mrf.mxu0
        %v788 = vadd.f32 0.0, %v787
        %789 = vmatmul.bf16.gmra.mxu0 %v740
        %v790 = vpop.f32.mrf.mxu0
        %v791 = vadd.f32 0.0, %v790
        %v792 = vpop.f32.mrf.mxu0
        %v793 = vadd.f32 0.0, %v792
        %794 = vdwg.mxu0
        %v795 = vadd.f32 %v596, %v756
        %v796 = vadd.f32 %v597, %v758
        %v797 = vadd.f32 %v598, %v761
        %v798 = vadd.f32 %v599, %v763
        %v799 = vadd.f32 %v600, %v766
        %v800 = vadd.f32 %v601, %v768
        %v801 = vadd.f32 %v602, %v771
        %v802 = vadd.f32 %v603, %v773
        %v803 = vadd.f32 %v604, %v776
        %v804 = vadd.f32 %v605, %v778
        %v805 = vadd.f32 %v606, %v781
        %v806 = vadd.f32 %v607, %v783
        %v807 = vadd.f32 %v608, %v786
        %v808 = vadd.f32 %v609, %v788
        %v809 = vadd.f32 %v610, %v791
        %v810 = vadd.f32 %v611, %v793
        %811 = vst [vmem:[#allocation2] sm:$0xff] %v795
        %812 = vst [vmem:[#allocation2 + $0x8] sm:$0xff] %v796
        %813 = vst [vmem:[#allocation2 + $0x10] sm:$0xff] %v797
        %814 = vst [vmem:[#allocation2 + $0x18] sm:$0xff] %v798
        %815 = vst [vmem:[#allocation2 + $0x20] sm:$0xff] %v799
        %816 = vst [vmem:[#allocation2 + $0x28] sm:$0xff] %v800
        %817 = vst [vmem:[#allocation2 + $0x30] sm:$0xff] %v801
        %818 = vst [vmem:[#allocation2 + $0x38] sm:$0xff] %v802
        %819 = vst [vmem:[#allocation2 + $0x40] sm:$0xff] %v803
        %820 = vst [vmem:[#allocation2 + $0x48] sm:$0xff] %v804
        %821 = vst [vmem:[#allocation2 + $0x50] sm:$0xff] %v805
        %822 = vst [vmem:[#allocation2 + $0x58] sm:$0xff] %v806
        %823 = vst [vmem:[#allocation2 + $0x60] sm:$0xff] %v807
        %824 = vst [vmem:[#allocation2 + $0x68] sm:$0xff] %v808
        %825 = vst [vmem:[#allocation2 + $0x70] sm:$0xff] %v809
        %826 = vst [vmem:[#allocation2 + $0x78] sm:$0x7f] %v810
        %v827 = vld [vmem:[%s389] sm:$0xf]
        %v828 = vld [vmem:[%s389 + $0x4] sm:$0xf]
        %v829 = vld [vmem:[%s389 + $0x8] sm:$0xf]
        %v830 = vld [vmem:[%s389 + $0xc] sm:$0xf]
        %v831 = vld [vmem:[%s389 + $0x10] sm:$0xf]
        %v832 = vld [vmem:[%s389 + $0x14] sm:$0xf]
        %v833 = vld [vmem:[%s389 + $0x18] sm:$0xf]
        %v834 = vld [vmem:[%s389 + $0x1c] sm:$0xf]
        %v835 = vld [vmem:[%s389 + $0x20] sm:$0xf]
        %v836 = vld [vmem:[%s389 + $0x24] sm:$0xf]
        %v837 = vld [vmem:[%s389 + $0x28] sm:$0xf]
        %v838 = vld [vmem:[%s389 + $0x2c] sm:$0xf]
        %v839 = vld [vmem:[%s389 + $0x30] sm:$0xf]
        %v840 = vld [vmem:[%s389 + $0x34] sm:$0xf]
        %v841 = vld [vmem:[%s389 + $0x38] sm:$0xf]
        %v842 = vld [vmem:[%s389 + $0x3c] sm:$0xf]
        %v843 = vld [vmem:[#allocation2] sm:$0xff]
        %v844 = vld [vmem:[#allocation2 + $0x8] sm:$0xff]
        %v845 = vld [vmem:[#allocation2 + $0x10] sm:$0xff]
        %v846 = vld [vmem:[#allocation2 + $0x18] sm:$0xff]
        %v847 = vld [vmem:[#allocation2 + $0x20] sm:$0xff]
        %v848 = vld [vmem:[#allocation2 + $0x28] sm:$0xff]
        %v849 = vld [vmem:[#allocation2 + $0x30] sm:$0xff]
        %v850 = vld [vmem:[#allocation2 + $0x38] sm:$0xff]
        %v851 = vld [vmem:[#allocation2 + $0x40] sm:$0xff]
        %v852 = vld [vmem:[#allocation2 + $0x48] sm:$0xff]
        %v853 = vld [vmem:[#allocation2 + $0x50] sm:$0xff]
        %v854 = vld [vmem:[#allocation2 + $0x58] sm:$0xff]
        %v855 = vld [vmem:[#allocation2 + $0x60] sm:$0xff]
        %v856 = vld [vmem:[#allocation2 + $0x68] sm:$0xff]
        %v857 = vld [vmem:[#allocation2 + $0x70] sm:$0xff]
        %v858 = vld [vmem:[#allocation2 + $0x78] sm:$0x7f]
        %s859 = scalar_lea.vmem %s420, 2
        %v860 = vld [vmem:[%s859] sm:$0x3]
        %v877 = vunpack.c.l.b16 %v827
        %v878 = vunpack.c.l.b16 %v828
        %v879 = vunpack.c.l.b16 %v829
        %v880 = vunpack.c.l.b16 %v830
        %v881 = vunpack.c.l.b16 %v831
        %v882 = vunpack.c.l.b16 %v832
        %v883 = vunpack.c.l.b16 %v833
        %v884 = vunpack.c.l.b16 %v834
        %v885 = vunpack.c.l.b16 %v835
        %v886 = vunpack.c.l.b16 %v836
        %v887 = vunpack.c.l.b16 %v837
        %v888 = vunpack.c.l.b16 %v838
        %v889 = vunpack.c.l.b16 %v839
        %v890 = vunpack.c.l.b16 %v840
        %v891 = vunpack.c.l.b16 %v841
        %v892 = vunpack.c.l.b16 %v842
        %v893 = vpack.c.b16 %v878, %v877
        %v894 = vpack.c.b16 %v880, %v879
        %v895 = vpack.c.b16 %v882, %v881
        %v896 = vpack.c.b16 %v884, %v883
        %v897 = vpack.c.b16 %v886, %v885
        %v898 = vpack.c.b16 %v888, %v887
        %v899 = vpack.c.b16 %v890, %v889
        %v900 = vpack.c.b16 %v892, %v891
        %v902 = vshrl.u32 %v893, 16
        %v904 = vshll.u32 %v893, 16
        %v906 = vrot.slane %v904, 1
        %v907 = vor.u32 %v902, %v906
        %v909 = vshll.u32 %v894, 16
        %v911 = vrot.slane %v909, 1
        %v912 = vsel %vm653, %v907, %v911
        %v913 = vshrl.u32 %v894, 16
        %v915 = vor.u32 %v913, %v911
        %v917 = vshll.u32 %v895, 16
        %v919 = vrot.slane %v917, 1
        %v920 = vsel %vm653, %v915, %v919
        %v921 = vshrl.u32 %v895, 16
        %v923 = vor.u32 %v921, %v919
        %v925 = vshll.u32 %v896, 16
        %v927 = vrot.slane %v925, 1
        %v928 = vsel %vm653, %v923, %v927
        %v929 = vshrl.u32 %v896, 16
        %v931 = vor.u32 %v929, %v927
        %v933 = vshll.u32 %v897, 16
        %v935 = vrot.slane %v933, 1
        %v936 = vsel %vm653, %v931, %v935
        %v937 = vshrl.u32 %v897, 16
        %v939 = vor.u32 %v937, %v935
        %v941 = vshll.u32 %v898, 16
        %v943 = vrot.slane %v941, 1
        %v944 = vsel %vm653, %v939, %v943
        %v945 = vshrl.u32 %v898, 16
        %v947 = vor.u32 %v945, %v943
        %v949 = vshll.u32 %v899, 16
        %v951 = vrot.slane %v949, 1
        %v952 = vsel %vm653, %v947, %v951
        %v953 = vshrl.u32 %v899, 16
        %v955 = vor.u32 %v953, %v951
        %v957 = vshll.u32 %v900, 16
        %v959 = vrot.slane %v957, 1
        %v960 = vsel %vm653, %v955, %v959
        %v961 = vshrl.u32 %v900, 16
        %v963 = vor.u32 %v961, %v959
        %964 = vrot.lane.b32.xlu0 %v912, 120
        %v965 = vpop.permute.xlu0 %964
        %966 = vrot.lane.b32.xlu0 %v920, 120
        %v967 = vpop.permute.xlu0 %966
        %968 = vrot.lane.b32.xlu0 %v928, 120
        %v969 = vpop.permute.xlu0 %968
        %970 = vrot.lane.b32.xlu0 %v936, 120
        %v971 = vpop.permute.xlu0 %970
        %972 = vrot.lane.b32.xlu0 %v944, 120
        %v973 = vpop.permute.xlu0 %972
        %974 = vrot.lane.b32.xlu0 %v952, 120
        %v975 = vpop.permute.xlu0 %974
        %976 = vrot.lane.b32.xlu0 %v960, 120
        %v977 = vpop.permute.xlu0 %976
        %978 = vrot.lane.b32.xlu0 %v963, 120
        %v979 = vpop.permute.xlu0 %978
        %v981 = vsel %vm717, %v965, 0
        %v984 = vsel %vm717, %v967, 0
        %v987 = vsel %vm717, %v969, 0
        %v990 = vsel %vm717, %v971, 0
        %v993 = vsel %vm717, %v973, 0
        %v996 = vsel %vm717, %v975, 0
        %v999 = vsel %vm717, %v977, 0
        %v1002 = vsel %vm717, %v979, 0
        %v1005 = vsel %vm742, %v860, 0
        %1007 = vmatpush.bf16.msra.mxu0 0
        %1008 = vmatpush.bf16.msra.mxu0 0
        %1009 = vmatpush.bf16.msra.mxu0 0
        %1010 = vmatpush.bf16.msra.mxu0 0
        %1011 = vmatpush.bf16.msra.mxu0 0
        %1012 = vmatpush.bf16.msra.mxu0 0
        %1013 = vmatpush.bf16.msra.mxu0 0
        %1014 = vmatpush.bf16.msra.mxu0 %v1005
        %1015 = vmatmul.bf16.gmra.mxu0 %v981
        %v1016 = vpop.f32.mrf.mxu0
        %v1017 = vadd.f32 0.0, %v1016
        %v1018 = vpop.f32.mrf.mxu0
        %v1019 = vadd.f32 0.0, %v1018
        %1020 = vmatmul.bf16.gmra.mxu0 %v984
        %v1021 = vpop.f32.mrf.mxu0
        %v1022 = vadd.f32 0.0, %v1021
        %v1023 = vpop.f32.mrf.mxu0
        %v1024 = vadd.f32 0.0, %v1023
        %1025 = vmatmul.bf16.gmra.mxu0 %v987
        %v1026 = vpop.f32.mrf.mxu0
        %v1027 = vadd.f32 0.0, %v1026
        %v1028 = vpop.f32.mrf.mxu0
        %v1029 = vadd.f32 0.0, %v1028
        %1030 = vmatmul.bf16.gmra.mxu0 %v990
        %v1031 = vpop.f32.mrf.mxu0
        %v1032 = vadd.f32 0.0, %v1031
        %v1033 = vpop.f32.mrf.mxu0
        %v1034 = vadd.f32 0.0, %v1033
        %1035 = vmatmul.bf16.gmra.mxu0 %v993
        %v1036 = vpop.f32.mrf.mxu0
        %v1037 = vadd.f32 0.0, %v1036
        %v1038 = vpop.f32.mrf.mxu0
        %v1039 = vadd.f32 0.0, %v1038
        %1040 = vmatmul.bf16.gmra.mxu0 %v996
        %v1041 = vpop.f32.mrf.mxu0
        %v1042 = vadd.f32 0.0, %v1041
        %v1043 = vpop.f32.mrf.mxu0
        %v1044 = vadd.f32 0.0, %v1043
        %1045 = vmatmul.bf16.gmra.mxu0 %v999
        %v1046 = vpop.f32.mrf.mxu0
        %v1047 = vadd.f32 0.0, %v1046
        %v1048 = vpop.f32.mrf.mxu0
        %v1049 = vadd.f32 0.0, %v1048
        %1050 = vmatmul.bf16.gmra.mxu0 %v1002
        %v1051 = vpop.f32.mrf.mxu0
        %v1052 = vadd.f32 0.0, %v1051
        %v1053 = vpop.f32.mrf.mxu0
        %v1054 = vadd.f32 0.0, %v1053
        %1055 = vdwg.mxu0
        %v1056 = vadd.f32 %v843, %v1017
        %v1057 = vadd.f32 %v844, %v1019
        %v1058 = vadd.f32 %v845, %v1022
        %v1059 = vadd.f32 %v846, %v1024
        %v1060 = vadd.f32 %v847, %v1027
        %v1061 = vadd.f32 %v848, %v1029
        %v1062 = vadd.f32 %v849, %v1032
        %v1063 = vadd.f32 %v850, %v1034
        %v1064 = vadd.f32 %v851, %v1037
        %v1065 = vadd.f32 %v852, %v1039
        %v1066 = vadd.f32 %v853, %v1042
        %v1067 = vadd.f32 %v854, %v1044
        %v1068 = vadd.f32 %v855, %v1047
        %v1069 = vadd.f32 %v856, %v1049
        %v1070 = vadd.f32 %v857, %v1052
        %v1071 = vadd.f32 %v858, %v1054
        %1072 = vst [vmem:[#allocation2] sm:$0xff] %v1056
        %1073 = vst [vmem:[#allocation2 + $0x8] sm:$0xff] %v1057
        %1074 = vst [vmem:[#allocation2 + $0x10] sm:$0xff] %v1058
        %1075 = vst [vmem:[#allocation2 + $0x18] sm:$0xff] %v1059
        %1076 = vst [vmem:[#allocation2 + $0x20] sm:$0xff] %v1060
        %1077 = vst [vmem:[#allocation2 + $0x28] sm:$0xff] %v1061
        %1078 = vst [vmem:[#allocation2 + $0x30] sm:$0xff] %v1062
        %1079 = vst [vmem:[#allocation2 + $0x38] sm:$0xff] %v1063
        %1080 = vst [vmem:[#allocation2 + $0x40] sm:$0xff] %v1064
        %1081 = vst [vmem:[#allocation2 + $0x48] sm:$0xff] %v1065
        %1082 = vst [vmem:[#allocation2 + $0x50] sm:$0xff] %v1066
        %1083 = vst [vmem:[#allocation2 + $0x58] sm:$0xff] %v1067
        %1084 = vst [vmem:[#allocation2 + $0x60] sm:$0xff] %v1068
        %1085 = vst [vmem:[#allocation2 + $0x68] sm:$0xff] %v1069
        %1086 = vst [vmem:[#allocation2 + $0x70] sm:$0xff] %v1070
        %1087 = vst [vmem:[#allocation2 + $0x78] sm:$0x7f] %v1071
        %v1088 = vld [vmem:[%s389 + $0x8] sm:$0xf]
        %v1089 = vld [vmem:[%s389 + $0xc] sm:$0xf]
        %v1090 = vld [vmem:[%s389 + $0x10] sm:$0xf]
        %v1091 = vld [vmem:[%s389 + $0x14] sm:$0xf]
        %v1092 = vld [vmem:[%s389 + $0x18] sm:$0xf]
        %v1093 = vld [vmem:[%s389 + $0x1c] sm:$0xf]
        %v1094 = vld [vmem:[%s389 + $0x20] sm:$0xf]
        %v1095 = vld [vmem:[%s389 + $0x24] sm:$0xf]
        %v1096 = vld [vmem:[%s389 + $0x28] sm:$0xf]
        %v1097 = vld [vmem:[%s389 + $0x2c] sm:$0xf]
        %v1098 = vld [vmem:[%s389 + $0x30] sm:$0xf]
        %v1099 = vld [vmem:[%s389 + $0x34] sm:$0xf]
        %v1100 = vld [vmem:[%s389 + $0x38] sm:$0xf]
        %v1101 = vld [vmem:[%s389 + $0x3c] sm:$0xf]
        %v1102 = vld [vmem:[#allocation2] sm:$0xff]
        %v1103 = vld [vmem:[#allocation2 + $0x8] sm:$0xff]
        %v1104 = vld [vmem:[#allocation2 + $0x10] sm:$0xff]
        %v1105 = vld [vmem:[#allocation2 + $0x18] sm:$0xff]
        %v1106 = vld [vmem:[#allocation2 + $0x20] sm:$0xff]
        %v1107 = vld [vmem:[#allocation2 + $0x28] sm:$0xff]
        %v1108 = vld [vmem:[#allocation2 + $0x30] sm:$0xff]
        %v1109 = vld [vmem:[#allocation2 + $0x38] sm:$0xff]
        %v1110 = vld [vmem:[#allocation2 + $0x40] sm:$0xff]
        %v1111 = vld [vmem:[#allocation2 + $0x48] sm:$0xff]
        %v1112 = vld [vmem:[#allocation2 + $0x50] sm:$0xff]
        %v1113 = vld [vmem:[#allocation2 + $0x58] sm:$0xff]
        %v1114 = vld [vmem:[#allocation2 + $0x60] sm:$0xff]
        %v1115 = vld [vmem:[#allocation2 + $0x68] sm:$0xff]
        %v1116 = vld [vmem:[%s416] sm:$0xf]
        %v1131 = vunpack.c.l.b16 %v1088
        %v1132 = vunpack.c.l.b16 %v1089
        %v1133 = vunpack.c.l.b16 %v1090
        %v1134 = vunpack.c.l.b16 %v1091
        %v1135 = vunpack.c.l.b16 %v1092
        %v1136 = vunpack.c.l.b16 %v1093
        %v1137 = vunpack.c.l.b16 %v1094
        %v1138 = vunpack.c.l.b16 %v1095
        %v1139 = vunpack.c.l.b16 %v1096
        %v1140 = vunpack.c.l.b16 %v1097
        %v1141 = vunpack.c.l.b16 %v1098
        %v1142 = vunpack.c.l.b16 %v1099
        %v1143 = vunpack.c.l.b16 %v1100
        %v1144 = vunpack.c.l.b16 %v1101
        %v1145 = vpack.c.b16 %v1132, %v1131
        %v1146 = vpack.c.b16 %v1134, %v1133
        %v1147 = vpack.c.b16 %v1136, %v1135
        %v1148 = vpack.c.b16 %v1138, %v1137
        %v1149 = vpack.c.b16 %v1140, %v1139
        %v1150 = vpack.c.b16 %v1142, %v1141
        %v1151 = vpack.c.b16 %v1144, %v1143
        %vm1152 = vcmask 64512
        %v1154 = vsel %vm1152, %v1145, 0
        %v1157 = vsel %vm1152, %v1146, 0
        %v1160 = vsel %vm1152, %v1147, 0
        %v1163 = vsel %vm1152, %v1148, 0
        %v1166 = vsel %vm1152, %v1149, 0
        %v1169 = vsel %vm1152, %v1150, 0
        %v1172 = vsel %vm1152, %v1151, 0
        %vm1174 = vcmask 1043456
        %v1176 = vsel %vm1174, %v1116, 0
        %1178 = vmatpush.bf16.msra.mxu0 0
        %1179 = vmatpush.bf16.msra.mxu0 0
        %1180 = vmatpush.bf16.msra.mxu0 0
        %1181 = vmatpush.bf16.msra.mxu0 0
        %1182 = vmatpush.bf16.msra.mxu0 0
        %1183 = vmatpush.bf16.msra.mxu0 0
        %1184 = vmatpush.bf16.msra.mxu0 0
        %1185 = vmatpush.bf16.msra.mxu0 %v1176
        %1186 = vmatmul.bf16.gmra.mxu0 %v1154
        %v1187 = vpop.f32.mrf.mxu0
        %v1188 = vadd.f32 0.0, %v1187
        %v1189 = vpop.f32.mrf.mxu0
        %v1190 = vadd.f32 0.0, %v1189
        %1191 = vmatmul.bf16.gmra.mxu0 %v1157
        %v1192 = vpop.f32.mrf.mxu0
        %v1193 = vadd.f32 0.0, %v1192
        %v1194 = vpop.f32.mrf.mxu0
        %v1195 = vadd.f32 0.0, %v1194
        %1196 = vmatmul.bf16.gmra.mxu0 %v1160
        %v1197 = vpop.f32.mrf.mxu0
        %v1198 = vadd.f32 0.0, %v1197
        %v1199 = vpop.f32.mrf.mxu0
        %v1200 = vadd.f32 0.0, %v1199
        %1201 = vmatmul.bf16.gmra.mxu0 %v1163
        %v1202 = vpop.f32.mrf.mxu0
        %v1203 = vadd.f32 0.0, %v1202
        %v1204 = vpop.f32.mrf.mxu0
        %v1205 = vadd.f32 0.0, %v1204
        %1206 = vmatmul.bf16.gmra.mxu0 %v1166
        %v1207 = vpop.f32.mrf.mxu0
        %v1208 = vadd.f32 0.0, %v1207
        %v1209 = vpop.f32.mrf.mxu0
        %v1210 = vadd.f32 0.0, %v1209
        %1211 = vmatmul.bf16.gmra.mxu0 %v1169
        %v1212 = vpop.f32.mrf.mxu0
        %v1213 = vadd.f32 0.0, %v1212
        %v1214 = vpop.f32.mrf.mxu0
        %v1215 = vadd.f32 0.0, %v1214
        %1216 = vmatmul.bf16.gmra.mxu0 %v1172
        %v1217 = vpop.f32.mrf.mxu0
        %v1218 = vadd.f32 0.0, %v1217
        %v1219 = vpop.f32.mrf.mxu0
        %v1220 = vadd.f32 0.0, %v1219
        %1221 = vdwg.mxu0
        %v1222 = vadd.f32 %v1102, %v1188
        %v1223 = vadd.f32 %v1103, %v1190
        %v1224 = vadd.f32 %v1104, %v1193
        %v1225 = vadd.f32 %v1105, %v1195
        %v1226 = vadd.f32 %v1106, %v1198
        %v1227 = vadd.f32 %v1107, %v1200
        %v1228 = vadd.f32 %v1108, %v1203
        %v1229 = vadd.f32 %v1109, %v1205
        %v1230 = vadd.f32 %v1110, %v1208
        %v1231 = vadd.f32 %v1111, %v1210
        %v1232 = vadd.f32 %v1112, %v1213
        %v1233 = vadd.f32 %v1113, %v1215
        %v1234 = vadd.f32 %v1114, %v1218
        %v1235 = vadd.f32 %v1115, %v1220
        %1236 = vst [vmem:[#allocation2] sm:$0xff] %v1222
        %1237 = vst [vmem:[#allocation2 + $0x8] sm:$0xff] %v1223
        %1238 = vst [vmem:[#allocation2 + $0x10] sm:$0xff] %v1224
        %1239 = vst [vmem:[#allocation2 + $0x18] sm:$0xff] %v1225
        %1240 = vst [vmem:[#allocation2 + $0x20] sm:$0xff] %v1226
        %1241 = vst [vmem:[#allocation2 + $0x28] sm:$0xff] %v1227
        %1242 = vst [vmem:[#allocation2 + $0x30] sm:$0xff] %v1228
        %1243 = vst [vmem:[#allocation2 + $0x38] sm:$0xff] %v1229
        %1244 = vst [vmem:[#allocation2 + $0x40] sm:$0xff] %v1230
        %1245 = vst [vmem:[#allocation2 + $0x48] sm:$0xff] %v1231
        %1246 = vst [vmem:[#allocation2 + $0x50] sm:$0xff] %v1232
        %1247 = vst [vmem:[#allocation2 + $0x58] sm:$0xff] %v1233
        %1248 = vst [vmem:[#allocation2 + $0x60] sm:$0xff] %v1234
        %1249 = vst [vmem:[#allocation2 + $0x68] sm:$0xff] %v1235
        %v1250 = vld [vmem:[%s389 + $0x8] sm:$0xf]
        %v1251 = vld [vmem:[%s389 + $0xc] sm:$0xf]
        %v1252 = vld [vmem:[%s389 + $0x10] sm:$0xf]
        %v1253 = vld [vmem:[%s389 + $0x14] sm:$0xf]
        %v1254 = vld [vmem:[%s389 + $0x18] sm:$0xf]
        %v1255 = vld [vmem:[%s389 + $0x1c] sm:$0xf]
        %v1256 = vld [vmem:[%s389 + $0x20] sm:$0xf]
        %v1257 = vld [vmem:[%s389 + $0x24] sm:$0xf]
        %v1258 = vld [vmem:[%s389 + $0x28] sm:$0xf]
        %v1259 = vld [vmem:[%s389 + $0x2c] sm:$0xf]
        %v1260 = vld [vmem:[%s389 + $0x30] sm:$0xf]
        %v1261 = vld [vmem:[%s389 + $0x34] sm:$0xf]
        %v1262 = vld [vmem:[%s389 + $0x38] sm:$0xf]
        %v1263 = vld [vmem:[%s389 + $0x3c] sm:$0xf]
        %v1264 = vld [vmem:[#allocation2] sm:$0xff]
        %v1265 = vld [vmem:[#allocation2 + $0x8] sm:$0xff]
        %v1266 = vld [vmem:[#allocation2 + $0x10] sm:$0xff]
        %v1267 = vld [vmem:[#allocation2 + $0x18] sm:$0xff]
        %v1268 = vld [vmem:[#allocation2 + $0x20] sm:$0xff]
        %v1269 = vld [vmem:[#allocation2 + $0x28] sm:$0xff]
        %v1270 = vld [vmem:[#allocation2 + $0x30] sm:$0xff]
        %v1271 = vld [vmem:[#allocation2 + $0x38] sm:$0xff]
        %v1272 = vld [vmem:[#allocation2 + $0x40] sm:$0xff]
        %v1273 = vld [vmem:[#allocation2 + $0x48] sm:$0xff]
        %v1274 = vld [vmem:[#allocation2 + $0x50] sm:$0xff]
        %v1275 = vld [vmem:[#allocation2 + $0x58] sm:$0xff]
        %v1276 = vld [vmem:[#allocation2 + $0x60] sm:$0xff]
        %v1277 = vld [vmem:[#allocation2 + $0x68] sm:$0x7f]
        %s1278 = scalar_lea.vmem %s420, 4
        %v1279 = vld [vmem:[%s1278] sm:$0x3]
        %v1294 = vunpack.c.l.b16 %v1250
        %v1295 = vunpack.c.l.b16 %v1251
        %v1296 = vunpack.c.l.b16 %v1252
        %v1297 = vunpack.c.l.b16 %v1253
        %v1298 = vunpack.c.l.b16 %v1254
        %v1299 = vunpack.c.l.b16 %v1255
        %v1300 = vunpack.c.l.b16 %v1256
        %v1301 = vunpack.c.l.b16 %v1257
        %v1302 = vunpack.c.l.b16 %v1258
        %v1303 = vunpack.c.l.b16 %v1259
        %v1304 = vunpack.c.l.b16 %v1260
        %v1305 = vunpack.c.l.b16 %v1261
        %v1306 = vunpack.c.l.b16 %v1262
        %v1307 = vunpack.c.l.b16 %v1263
        %v1308 = vpack.c.b16 %v1295, %v1294
        %v1309 = vpack.c.b16 %v1297, %v1296
        %v1310 = vpack.c.b16 %v1299, %v1298
        %v1311 = vpack.c.b16 %v1301, %v1300
        %v1312 = vpack.c.b16 %v1303, %v1302
        %v1313 = vpack.c.b16 %v1305, %v1304
        %v1314 = vpack.c.b16 %v1307, %v1306
        %v1316 = vshrl.u32 %v1308, 16
        %v1318 = vshll.u32 %v1308, 16
        %v1320 = vrot.slane %v1318, 1
        %v1321 = vor.u32 %v1316, %v1320
        %v1323 = vshll.u32 %v1309, 16
        %v1325 = vrot.slane %v1323, 1
        %v1326 = vsel %vm653, %v1321, %v1325
        %v1327 = vshrl.u32 %v1309, 16
        %v1329 = vor.u32 %v1327, %v1325
        %v1331 = vshll.u32 %v1310, 16
        %v1333 = vrot.slane %v1331, 1
        %v1334 = vsel %vm653, %v1329, %v1333
        %v1335 = vshrl.u32 %v1310, 16
        %v1337 = vor.u32 %v1335, %v1333
        %v1339 = vshll.u32 %v1311, 16
        %v1341 = vrot.slane %v1339, 1
        %v1342 = vsel %vm653, %v1337, %v1341
        %v1343 = vshrl.u32 %v1311, 16
        %v1345 = vor.u32 %v1343, %v1341
        %v1347 = vshll.u32 %v1312, 16
        %v1349 = vrot.slane %v1347, 1
        %v1350 = vsel %vm653, %v1345, %v1349
        %v1351 = vshrl.u32 %v1312, 16
        %v1353 = vor.u32 %v1351, %v1349
        %v1355 = vshll.u32 %v1313, 16
        %v1357 = vrot.slane %v1355, 1
        %v1358 = vsel %vm653, %v1353, %v1357
        %v1359 = vshrl.u32 %v1313, 16
        %v1361 = vor.u32 %v1359, %v1357
        %v1363 = vshll.u32 %v1314, 16
        %v1365 = vrot.slane %v1363, 1
        %v1366 = vsel %vm653, %v1361, %v1365
        %v1367 = vshrl.u32 %v1314, 16
        %v1369 = vor.u32 %v1367, %v1365
        %v1371 = vsel %vm717, %v1326, 0
        %v1374 = vsel %vm717, %v1334, 0
        %v1377 = vsel %vm717, %v1342, 0
        %v1380 = vsel %vm717, %v1350, 0
        %v1383 = vsel %vm717, %v1358, 0
        %v1386 = vsel %vm717, %v1366, 0
        %v1389 = vsel %vm717, %v1369, 0
        %v1392 = vsel %vm742, %v1279, 0
        %1394 = vmatpush.bf16.msra.mxu0 0
        %1395 = vmatpush.bf16.msra.mxu0 0
        %1396 = vmatpush.bf16.msra.mxu0 0
        %1397 = vmatpush.bf16.msra.mxu0 0
        %1398 = vmatpush.bf16.msra.mxu0 0
        %1399 = vmatpush.bf16.msra.mxu0 0
        %1400 = vmatpush.bf16.msra.mxu0 0
        %1401 = vmatpush.bf16.msra.mxu0 %v1392
        %1402 = vmatmul.bf16.gmra.mxu0 %v1371
        %v1403 = vpop.f32.mrf.mxu0
        %v1404 = vadd.f32 0.0, %v1403
        %v1405 = vpop.f32.mrf.mxu0
        %v1406 = vadd.f32 0.0, %v1405
        %1407 = vmatmul.bf16.gmra.mxu0 %v1374
        %v1408 = vpop.f32.mrf.mxu0
        %v1409 = vadd.f32 0.0, %v1408
        %v1410 = vpop.f32.mrf.mxu0
        %v1411 = vadd.f32 0.0, %v1410
        %1412 = vmatmul.bf16.gmra.mxu0 %v1377
        %v1413 = vpop.f32.mrf.mxu0
        %v1414 = vadd.f32 0.0, %v1413
        %v1415 = vpop.f32.mrf.mxu0
        %v1416 = vadd.f32 0.0, %v1415
        %1417 = vmatmul.bf16.gmra.mxu0 %v1380
        %v1418 = vpop.f32.mrf.mxu0
        %v1419 = vadd.f32 0.0, %v1418
        %v1420 = vpop.f32.mrf.mxu0
        %v1421 = vadd.f32 0.0, %v1420
        %1422 = vmatmul.bf16.gmra.mxu0 %v1383
        %v1423 = vpop.f32.mrf.mxu0
        %v1424 = vadd.f32 0.0, %v1423
        %v1425 = vpop.f32.mrf.mxu0
        %v1426 = vadd.f32 0.0, %v1425
        %1427 = vmatmul.bf16.gmra.mxu0 %v1386
        %v1428 = vpop.f32.mrf.mxu0
        %v1429 = vadd.f32 0.0, %v1428
        %v1430 = vpop.f32.mrf.mxu0
        %v1431 = vadd.f32 0.0, %v1430
        %1432 = vmatmul.bf16.gmra.mxu0 %v1389
        %v1433 = vpop.f32.mrf.mxu0
        %v1434 = vadd.f32 0.0, %v1433
        %v1435 = vpop.f32.mrf.mxu0
        %v1436 = vadd.f32 0.0, %v1435
        %1437 = vdwg.mxu0
        %v1438 = vadd.f32 %v1264, %v1404
        %v1439 = vadd.f32 %v1265, %v1406
        %v1440 = vadd.f32 %v1266, %v1409
        %v1441 = vadd.f32 %v1267, %v1411
        %v1442 = vadd.f32 %v1268, %v1414
        %v1443 = vadd.f32 %v1269, %v1416
        %v1444 = vadd.f32 %v1270, %v1419
        %v1445 = vadd.f32 %v1271, %v1421
        %v1446 = vadd.f32 %v1272, %v1424
        %v1447 = vadd.f32 %v1273, %v1426
        %v1448 = vadd.f32 %v1274, %v1429
        %v1449 = vadd.f32 %v1275, %v1431
        %v1450 = vadd.f32 %v1276, %v1434
        %v1451 = vadd.f32 %v1277, %v1436
        %1452 = vst [vmem:[#allocation2] sm:$0xff] %v1438
        %1453 = vst [vmem:[#allocation2 + $0x8] sm:$0xff] %v1439
        %1454 = vst [vmem:[#allocation2 + $0x10] sm:$0xff] %v1440
        %1455 = vst [vmem:[#allocation2 + $0x18] sm:$0xff] %v1441
        %1456 = vst [vmem:[#allocation2 + $0x20] sm:$0xff] %v1442
        %1457 = vst [vmem:[#allocation2 + $0x28] sm:$0xff] %v1443
        %1458 = vst [vmem:[#allocation2 + $0x30] sm:$0xff] %v1444
        %1459 = vst [vmem:[#allocation2 + $0x38] sm:$0xff] %v1445
        %1460 = vst [vmem:[#allocation2 + $0x40] sm:$0xff] %v1446
        %1461 = vst [vmem:[#allocation2 + $0x48] sm:$0xff] %v1447
        %1462 = vst [vmem:[#allocation2 + $0x50] sm:$0xff] %v1448
        %1463 = vst [vmem:[#allocation2 + $0x58] sm:$0xff] %v1449
        %1464 = vst [vmem:[#allocation2 + $0x60] sm:$0xff] %v1450
        %1465 = vst [vmem:[#allocation2 + $0x68] sm:$0x7f] %v1451
        %v1466 = vld [vmem:[%s405] sm:$0xf]
        %v1467 = vld [vmem:[%s405 + $0x4] sm:$0xf]
        %v1468 = vld [vmem:[#allocation2 + $0x70] sm:$0xff]
        %v1469 = vld [vmem:[#allocation2 + $0x78] sm:$0xff]
        %v1470 = vld [vmem:[%s416] sm:$0xf]
        %v1473 = vunpack.c.l.b16 %v1466
        %v1474 = vunpack.c.l.b16 %v1467
        %v1475 = vpack.c.b16 %v1474, %v1473
        %v1477 = vsel %vm1152, %v1475, 0
        %v1480 = vsel %vm1174, %v1470, 0
        %1482 = vmatpush.bf16.msra.mxu0 0
        %1483 = vmatpush.bf16.msra.mxu0 0
        %1484 = vmatpush.bf16.msra.mxu0 0
        %1485 = vmatpush.bf16.msra.mxu0 0
        %1486 = vmatpush.bf16.msra.mxu0 0
        %1487 = vmatpush.bf16.msra.mxu0 0
        %1488 = vmatpush.bf16.msra.mxu0 0
        %1489 = vmatpush.bf16.msra.mxu0 %v1480
        %1490 = vmatmul.bf16.gmra.mxu0 %v1477
        %v1491 = vpop.f32.mrf.mxu0
        %v1492 = vadd.f32 0.0, %v1491
        %v1493 = vpop.f32.mrf.mxu0
        %v1494 = vadd.f32 0.0, %v1493
        %1495 = vdwg.mxu0
        %v1496 = vadd.f32 %v1468, %v1492
        %v1497 = vadd.f32 %v1469, %v1494
        %1498 = vst [vmem:[#allocation2 + $0x70] sm:$0xff] %v1496
        %1499 = vst [vmem:[#allocation2 + $0x78] sm:$0xff] %v1497
        %v1500 = vld [vmem:[%s405] sm:$0xf]
        %v1501 = vld [vmem:[%s405 + $0x4] sm:$0xf]
        %v1502 = vld [vmem:[#allocation2 + $0x70] sm:$0xff]
        %v1503 = vld [vmem:[#allocation2 + $0x78] sm:$0x7f]
        %v1504 = vld [vmem:[%s1278] sm:$0x3]
        %v1507 = vunpack.c.l.b16 %v1500
        %v1508 = vunpack.c.l.b16 %v1501
        %v1509 = vpack.c.b16 %v1508, %v1507
        %v1511 = vshrl.u32 %v1509, 16
        %v1513 = vshll.u32 %v1509, 16
        %v1515 = vrot.slane %v1513, 1
        %v1516 = vor.u32 %v1511, %v1515
        %v1518 = vsel %vm717, %v1516, 0
        %v1521 = vsel %vm742, %v1504, 0
        %1523 = vmatpush.bf16.msra.mxu0 0
        %1524 = vmatpush.bf16.msra.mxu0 0
        %1525 = vmatpush.bf16.msra.mxu0 0
        %1526 = vmatpush.bf16.msra.mxu0 0
        %1527 = vmatpush.bf16.msra.mxu0 0
        %1528 = vmatpush.bf16.msra.mxu0 0
        %1529 = vmatpush.bf16.msra.mxu0 0
        %1530 = vmatpush.bf16.msra.mxu0 %v1521
        %1531 = vmatmul.bf16.gmra.mxu0 %v1518
        %v1532 = vpop.f32.mrf.mxu0
        %v1533 = vadd.f32 0.0, %v1532
        %v1534 = vpop.f32.mrf.mxu0
        %v1535 = vadd.f32 0.0, %v1534
        %1536 = vdwg.mxu0
        %v1537 = vadd.f32 %v1502, %v1533
        %v1538 = vadd.f32 %v1503, %v1535
        %1539 = vst [vmem:[#allocation2 + $0x70] sm:$0xff] %v1537
        %1540 = vst [vmem:[#allocation2 + $0x78] sm:$0x7f] %v1538
        %v1541 = vld [vmem:[%s423] sm:$0x1]
        %v1543 = vperm.slane %v1541, 0
        %v1545 = vld [vmem:[#allocation2] sm:$0xff]
        %v1546 = vadd.f32 %v1545, %v1543
        %1547 = vst [vmem:[%s376] sm:$0xff] %v1546
        %v1548 = vld [vmem:[#allocation2 + $0x10] sm:$0xff]
        %v1549 = vadd.f32 %v1548, %v1543
        %s1550 = scalar_lea.vmem %s376, 8 [#allocation3]
        %1551 = vst [vmem:[%s1550] sm:$0xff] %v1549
        %v1552 = vld [vmem:[#allocation2 + $0x20] sm:$0xff]
        %v1553 = vadd.f32 %v1552, %v1543
        %s1554 = scalar_lea.vmem %s376, 16 [#allocation3]
        %1555 = vst [vmem:[%s1554] sm:$0xff] %v1553
        %v1556 = vld [vmem:[#allocation2 + $0x30] sm:$0xff]
        %v1557 = vadd.f32 %v1556, %v1543
        %s1558 = scalar_lea.vmem %s376, 24 [#allocation3]
        %1559 = vst [vmem:[%s1558] sm:$0xff] %v1557
        %v1560 = vld [vmem:[#allocation2 + $0x40] sm:$0xff]
        %v1561 = vadd.f32 %v1560, %v1543
        %s1562 = scalar_lea.vmem %s376, 32 [#allocation3]
        %1563 = vst [vmem:[%s1562] sm:$0xff] %v1561
        %v1564 = vld [vmem:[#allocation2 + $0x50] sm:$0xff]
        %v1565 = vadd.f32 %v1564, %v1543
        %s1566 = scalar_lea.vmem %s376, 40 [#allocation3]
        %1567 = vst [vmem:[%s1566] sm:$0xff] %v1565
        %v1568 = vld [vmem:[#allocation2 + $0x60] sm:$0xff]
        %v1569 = vadd.f32 %v1568, %v1543
        %s1570 = scalar_lea.vmem %s376, 48 [#allocation3]
        %1571 = vst [vmem:[%s1570] sm:$0xff] %v1569
        %v1572 = vld [vmem:[#allocation2 + $0x70] sm:$0xff]
        %v1573 = vadd.f32 %v1572, %v1543
        %s1574 = scalar_lea.vmem %s376, 56 [#allocation3]
        %1575 = vst [vmem:[%s1574] sm:$0xff] %v1573
        %s1576 = sand.u32 %s215, 1
        %s1577 = scalar_lea.sflag [#allocation4], %s1576
        %s1578 = sand.u32 %s215, 1
        %s1579 = smul.addr %s1578, 64
        %s1580 = scalar_lea.vmem [#allocation3], %s1579
        // Predicated region
        $region45: #{tpu_custom_call.1} parent=43 // pred_check
          %p1581 = pneg %p225
        $region46: #{tpu_custom_call.1} parent=43 // pred_check_branch
          %1583 = sbr.rel (%p1581) target = $region48
        $region47: #{tpu_custom_call.1} parent=43 // pred_region
          %s1584 = smul.u32 8, %s26
          %1586 = vsyncadd %s1577, 0
          %s1587 = sadd.s32 %s27, %s1584
          %s1588 = smul.addr %s25, 8
          %s1589 = sadd.s32 %s1587, %s1588
          %s1590 = smul.addr %s1589, 8
          %s1591 = scalar_lea.hbm %s6, %s1590
          %s1592 = sshll.u32 %s1580, 4
          %s1593 = int_to_ptr.vmem [resolvable:$true] %s1592
          %s1594 = sshll.u32 %s1591, 4
          %s1595 = int_to_ptr.hbm [resolvable:$true] %s1594
          %1600 = dma.vmem_to_hbm [thread:$0]  %s1593, 1024, %s1595, %s1577, 128, 128, 8
        $region48: #{tpu_custom_call.1} parent=43 // pred_fallthru
          _
      $region44: #{tpu_custom_call.1} parent=5 // pred_fallthru
        _
      %p1601 = scmp.le.s32.totalorder 2, %s15
      // Predicated region
      $region49: #{tpu_custom_call.1} parent=5 // pred_check
        %p1602 = pneg %p1601
      $region50: #{tpu_custom_call.1} parent=5 // pred_check_branch
        %1604 = sbr.rel (%p1602) target = $region52
      $region51: #{tpu_custom_call.1} parent=5 // pred_region
        %s1605 = ssub.s32 %s15, 2
        // Predicated region
        $region53: #{tpu_custom_call.1} parent=51 // pred_check
          %p1606 = pneg %p231
        $region54: #{tpu_custom_call.1} parent=51 // pred_check_branch
          %1608 = sbr.rel (%p1606) target = $region56
        $region55: #{tpu_custom_call.1} parent=51 // pred_region
          %s1609 = sand.u32 %s216, 1
          %s1610 = scalar_lea.sflag [#allocation4], %s1609
          %s1611 = sand.u32 %s216, 1
          %s1612 = smul.addr %s1611, 64
          %s1613 = scalar_lea.vmem [#allocation3], %s1612
          %1615 = dma.done %s1610, 1024
        $region56: #{tpu_custom_call.1} parent=51 // pred_fallthru
          _
      $region52: #{tpu_custom_call.1} parent=5 // pred_fallthru
        _
    $region6: #{tpu_custom_call.1} parent=1 // loop_footer
      %s19 = sadd.s32 1, %s15
    $region7: #{tpu_custom_call.1} parent=1 // loop_footer_branch
      %14 = sbr.rel target = $region3
    $region8: #{tpu_custom_call.1} parent=1 // loop_exit
      _
    %1616 = vsyncpa [#allocation4], 1
    %s1617 = scalar_lea.sflag [#allocation4], 1
    %1618 = vsyncpa %s1617, 1

</llo_original>
